<compile_context>
chip_gen: v6e
topology: v6e:2x2x1
jax: 0.10.0
libtpu: 0.0.40
codegen_flags: <defaults>
</compile_context>

<pallas_src>
import functools

import jax
import jax.numpy as jnp
from jax.experimental import pallas as pl
from jax.experimental.pallas import tpu as pltpu


# ----------------------------------------------------------------------------
# Fused Pallas kernel
# ----------------------------------------------------------------------------
def _bottleneck_kernel(pos_ref, wcol_ref, x_ref, w1_ref, s1_ref, b1_ref,
                       w2_ref, s2_ref, b2_ref, o_ref,
                       pad_ref, col_ref,
                       *, K, H, W, C1, Cm, C2, add, PAD):
    """conv3x3+BN+Hardswish -> conv3x3+BN+Hardswish (+ residual), fully fused.

    Activations are (C, N) slabs with N = Bblk*H*W on the lane axis.
      pad_ref: (max(C1,Cm), N + 2*PAD) f32 scratch; halo strips stay zero.
      col_ref: (K*K*max(C1,Cm), N)     bf16 scratch; im2col matmul operand.
    """
    N = x_ref.shape[1]                       # Bblk * H * W lanes per grid step
    half = K // 2
    pos = pos_ref[...]                       # (1, N) flattened pos inside image
    wcol = wcol_ref[...]                     # (1, N) w coordinate inside row

    # Hoisted edge-validity masks (built once, reused by every tap of BOTH
    # convs).  They also prevent taps from reading the neighbouring image now
    # that the batch is folded onto the lane axis.
    valid_h, valid_w = {}, {}
    for d in range(1, half + 1):
        valid_h[-d] = pos >= d * W           # source row h-d exists
        valid_h[d] = pos < (H - d) * W       # source row h+d exists
        valid_w[-d] = wcol >= d              # source col w-d exists
        valid_w[d] = wcol < W - d            # source col w+d exists

    # Only the halo strips need zeroing (interior is overwritten per conv) and
    # even that is redundant with the masks -- kept as a cheap guarantee that
    # no lane ever observes uninitialized VMEM.  Deliberately NOT gated on
    # pl.program_id(0)==0: with a "parallel" grid axis core 1 never runs step 0.
    zero_strip = jnp.zeros((pad_ref.shape[0], PAD), jnp.float32)
    pad_ref[:, 0:PAD] = zero_strip
    pad_ref[:, PAD + N:2 * PAD + N] = zero_strip

    def conv_same(xin, cin, w_ref_):
        """K x K 'same' conv: (cin, N) -> (cout, N) via one deep MXU matmul."""
        # PAD and N are multiples of 128, so this interior store is lane-aligned.
        pad_ref[0:cin, PAD:PAD + N] = xin
        for kh in range(K):
            dh = kh - half
            for kw in range(K):
                dw = kw - half
                r = (kh * K + kw) * cin
                if dh == 0 and dw == 0:
                    # Centre tap: no shift, no mask -> skip the pad round-trip.
                    col_ref[r:r + cin, :] = xin.astype(jnp.bfloat16)
                    continue
                off = dh * W + dw            # out[p] needs x[p + off]
                tap = pad_ref[0:cin, PAD + off:PAD + off + N]
                m = valid_h[dh] if dh != 0 else None
                if dw != 0:
                    m = valid_w[dw] if m is None else (m & valid_w[dw])
                tap = jnp.where(m, tap, 0.0)
                col_ref[r:r + cin, :] = tap.astype(jnp.bfloat16)
        a = col_ref[0:K * K * cin, :]        # (K*K*cin, N) bf16
        # (cout, K*K*cin) x (K*K*cin, N) -> (cout, N), f32 accumulation.
        return jnp.dot(w_ref_[...], a, preferred_element_type=jnp.float32)

    def bn_hswish(y, s_ref, b_ref):
        y = y * s_ref[...] + b_ref[...]                      # folded eval BN
        return y * jnp.clip(y + 3.0, 0.0, 6.0) * (1.0 / 6.0)  # Hardswish

    x = x_ref[...]                                           # (C1, N) f32
    y1 = bn_hswish(conv_same(x, C1, w1_ref), s1_ref, b1_ref)   # (Cm, N)
    y2 = bn_hswish(conv_same(y1, Cm, w2_ref), s2_ref, b2_ref)  # (C2, N)
    if add:
        y2 = y2 + x                        # residual: reuse resident x slab
    o_ref[...] = y2.astype(o_ref.dtype)


# ----------------------------------------------------------------------------
# Wrapper
# ----------------------------------------------------------------------------
@functools.partial(jax.jit, static_argnames=("shortcut",))
def bottleneck_forward(x_nchw, params, shortcut=True):
    """Bottleneck forward.  x_nchw: (B, C1, H, W) f32 (PyTorch layout)."""
    B, C1, H, W = x_nchw.shape
    HW = H * W
    Cm = params["w1"].shape[0]
    C2 = params["w2"].shape[0]
    K = int(round((params["w1"].shape[1] // C1) ** 0.5))
    assert K % 2 == 1, "even kernel sizes (asymmetric autopad) not supported"
    add = shortcut and (C1 == C2)

    # Images per grid step: fold as many whole images onto the lane axis as a
    # modest budget allows (amortizes per-step overhead, widens the matmul N).
    MAX_LANES = 8192
    divisors = [d for d in range(1, B + 1) if B % d == 0 and d * HW <= MAX_LANES]
    Bblk = max(divisors) if divisors else 1
    N = Bblk * HW
    steps = B // Bblk

    # Halo width in the flattened-lane domain, rounded up to a vreg width so
    # the interior store inside the kernel is lane-aligned.
    PAD = -(-((K // 2) * (W + 1)) // 128) * 128
    Cmax = max(C1, Cm)

    # Lane-dense layout plumbing (tiny XLA transpose outside the kernel):
    # (B, C1, H, W) -> (C1, B*HW) so pixels sit on lanes, channels feed the MXU.
    x_slab = jnp.transpose(x_nchw.reshape(B, C1, HW), (1, 0, 2)).reshape(C1, B * HW)
    p = jnp.arange(N, dtype=jnp.int32) % HW          # position within its image
    pos = p.reshape(1, N)
    wcol = (p % W).reshape(1, N)

    kernel = functools.partial(
        _bottleneck_kernel,
        K=K, H=H, W=W, C1=C1, Cm=Cm, C2=C2, add=add, PAD=PAD)

    lane_map = lambda g: (0, g)
    rep_map = lambda g: (0, 0)

    out_slab = pl.pallas_call(
        kernel,
        out_shape=jax.ShapeDtypeStruct((C2, B * HW), x_nchw.dtype),
        grid=(steps,),
        in_specs=[
            pl.BlockSpec((1, N), rep_map),            # pos within image
            pl.BlockSpec((1, N), rep_map),            # w coordinate
            pl.BlockSpec((C1, N), lane_map),          # x slab (also residual)
            pl.BlockSpec((Cm, K * K * C1), rep_map),  # cv1 weights (bf16)
            pl.BlockSpec((Cm, 1), rep_map),           # cv1 folded-BN scale
            pl.BlockSpec((Cm, 1), rep_map),           # cv1 folded-BN bias
            pl.BlockSpec((C2, K * K * Cm), rep_map),  # cv2 weights (bf16)
            pl.BlockSpec((C2, 1), rep_map),           # cv2 folded-BN scale
            pl.BlockSpec((C2, 1), rep_map),           # cv2 folded-BN bias
        ],
        out_specs=pl.BlockSpec((C2, N), lane_map),    # lane-dense output slab
        scratch_shapes=[
            pltpu.VMEM((Cmax, N + 2 * PAD), jnp.float32),  # halo-padded slab
            pltpu.VMEM((K * K * Cmax, N), jnp.bfloat16),   # im2col operand (bf16)
        ],
        compiler_params=pltpu.CompilerParams(
            dimension_semantics=("parallel",),  # batch blocks shard across TCs
            vmem_limit_bytes=32 * 1024 * 1024),
    )(pos, wcol, x_slab, params["w1"], params["s1"], params["b1"],
      params["w2"], params["s2"], params["b2"])

    return jnp.transpose(out_slab.reshape(C2, B, HW), (1, 0, 2)).reshape(B, C2, H, W)


# ----------------------------------------------------------------------------
# Parameter setup (deterministic, synthetic)
# ----------------------------------------------------------------------------
def _fold_bn(gamma, beta, mean, var, eps=1e-5):
    scale = gamma / jnp.sqrt(var + eps)
    bias = beta - mean * scale
    return scale, bias


def init_bottleneck_params(key, c1, c2, k=3, e=0.5):
    """Synthetic params matching the PyTorch module's shapes.

    Conv weights are generated in PyTorch OIHW layout, then rearranged into
    the (Cout, K*K*Cin) matmul layout (tap-major, channel-minor) in bf16 for
    the MXU; eval-mode BatchNorm is folded into per-channel (scale, bias).
    """
    c_ = int(c2 * e)
    ks = jax.random.split(key, 10)

    def conv_block(kw_, kg, kb, km, kv, cin, cout):
        w = 0.2 * jax.random.normal(kw_, (cout, cin, k, k), jnp.float32)  # OIHW
        gamma = 1.0 + 0.1 * jax.random.normal(kg, (cout,), jnp.float32)
        beta = 0.1 * jax.random.normal(kb, (cout,), jnp.float32)
        mean = 0.1 * jax.random.normal(km, (cout,), jnp.float32)
        var = jax.random.uniform(kv, (cout,), jnp.float32, minval=0.5, maxval=1.5)
        scale, bias = _fold_bn(gamma, beta, mean, var)
        # OIHW -> (O, Kh, Kw, I) -> (O, K*K*I): matches the kernel's im2col
        # row ordering r = (kh*K + kw) * Cin + ci.
        w_mat = jnp.transpose(w, (0, 2, 3, 1)).reshape(cout, k * k * cin)
        return dict(w_oihw=w, w_mat=w_mat.astype(jnp.bfloat16),
                    scale=scale.reshape(cout, 1), bias=bias.reshape(cout, 1))

    blk1 = conv_block(ks[0], ks[1], ks[2], ks[3], ks[4], c1, c_)
    blk2 = conv_block(ks[5], ks[6], ks[7], ks[8], ks[9], c_, c2)
    return dict(
        w1=blk1["w_mat"], s1=blk1["scale"], b1=blk1["bias"], w1_oihw=blk1["w_oihw"],
        w2=blk2["w_mat"], s2=blk2["scale"], b2=blk2["bias"], w2_oihw=blk2["w_oihw"])


# ----------------------------------------------------------------------------
# Pure-JAX reference (for correctness check)
# ----------------------------------------------------------------------------
def _ref_conv_bn_hswish(x, w_oihw, scale, bias, mxu_dtype=None):
    lhs, rhs = x, w_oihw
    if mxu_dtype is not None:        # mirror the kernel's bf16 MXU operands
        lhs = lhs.astype(mxu_dtype)
        rhs = rhs.astype(mxu_dtype)
    y = jax.lax.conv_general_dilated(
        lhs, rhs, window_strides=(1, 1), padding="SAME",
        dimension_numbers=("NCHW", "OIHW", "NCHW"),
        preferred_element_type=jnp.float32)
    y = y * scale.reshape(1, -1, 1, 1) + bias.reshape(1, -1, 1, 1)
    return y * jnp.clip(y + 3.0, 0.0, 6.0) / 6.0


def bottleneck_reference(x_nchw, params, shortcut=True, mxu_dtype=None):
    c1 = x_nchw.shape[1]
    c2 = params["w2_oihw"].shape[0]
    y = _ref_conv_bn_hswish(x_nchw, params["w1_oihw"], params["s1"], params["b1"],
                            mxu_dtype)
    y = _ref_conv_bn_hswish(y, params["w2_oihw"], params["s2"], params["b2"],
                            mxu_dtype)
    if shortcut and c1 == c2:
        y = y + x_nchw
    return y


# ----------------------------------------------------------------------------
if __name__ == "__main__":
    key = jax.random.PRNGKey(0)
    k_x, k_p = jax.random.split(key)

    # Small shapes consistent with the module: Bottleneck(c1=4, c2=4) -> c_=2.
    B, C1, C2, H, W = 2, 4, 4, 16, 16
    x = jax.random.normal(k_x, (B, C1, H, W), jnp.float32)   # PyTorch NCHW
    params = init_bottleneck_params(k_p, C1, C2)

    out = bottleneck_forward(x, params, shortcut=True)
    out = jax.block_until_ready(out)
    assert out.shape == (B, C2, H, W), out.shape

    # Primary check: reference with the same MXU numerics (bf16 operands,
    # f32 accumulation / epilogue) -> differences are accumulation order only.
    ref_bf16 = bottleneck_reference(x, params, shortcut=True,
                                    mxu_dtype=jnp.bfloat16)
    err_bf16 = float(jnp.max(jnp.abs(out - ref_bf16)))
    assert err_bf16 < 2e-2, f"max abs error vs bf16-matched reference {err_bf16}"

    # Sanity bound vs the pure-f32 reference (bounds the bf16 rounding impact).
    ref_f32 = bottleneck_reference(x, params, shortcut=True, mxu_dtype=None)
    err_f32 = float(jnp.max(jnp.abs(out - ref_f32)))
    assert err_f32 < 2e-1, f"max abs error vs f32 reference {err_f32}"

    print("KERNEL_OK")
</pallas_src>

<mosaic_0001>
module attributes {stable_mosaic.version = 11 : i64} {
  func.func @_bottleneck_kernel(%arg0: i32, %arg1: memref<1x512xi32, #tpu.memory_space<vmem>>, %arg2: memref<1x512xi32, #tpu.memory_space<vmem>>, %arg3: memref<4x512xf32, #tpu.memory_space<vmem>>, %arg4: memref<2x36xbf16, #tpu.memory_space<vmem>>, %arg5: memref<2x1xf32, #tpu.memory_space<vmem>>, %arg6: memref<2x1xf32, #tpu.memory_space<vmem>>, %arg7: memref<4x18xbf16, #tpu.memory_space<vmem>>, %arg8: memref<4x1xf32, #tpu.memory_space<vmem>>, %arg9: memref<4x1xf32, #tpu.memory_space<vmem>>, %arg10: memref<4x512xf32, #tpu.memory_space<vmem>>, %arg11: memref<4x768xf32, #tpu.memory_space<vmem>>, %arg12: memref<36x512xbf16, #tpu.memory_space<vmem>>) attributes {dimension_semantics = [#tpu.dimension_semantics<parallel>], iteration_bounds = array<i64: 1>, scalar_prefetch = 0 : i64, scratch_operands = 2 : i64, tpu.core_type = #tpu.core_type<tc>, window_params = [{pipeline_mode = #tpu.pipeline_mode<synchronous>, transform_indices = @transform_0, window_bounds = array<i64: 1, 512>}, {pipeline_mode = #tpu.pipeline_mode<synchronous>, transform_indices = @transform_1, window_bounds = array<i64: 1, 512>}, {transform_indices = @transform_2, window_bounds = array<i64: 4, 512>}, {pipeline_mode = #tpu.pipeline_mode<synchronous>, transform_indices = @transform_3, window_bounds = array<i64: 2, 36>}, {pipeline_mode = #tpu.pipeline_mode<synchronous>, transform_indices = @transform_4, window_bounds = array<i64: 2, 1>}, {pipeline_mode = #tpu.pipeline_mode<synchronous>, transform_indices = @transform_5, window_bounds = array<i64: 2, 1>}, {pipeline_mode = #tpu.pipeline_mode<synchronous>, transform_indices = @transform_6, window_bounds = array<i64: 4, 18>}, {pipeline_mode = #tpu.pipeline_mode<synchronous>, transform_indices = @transform_7, window_bounds = array<i64: 4, 1>}, {pipeline_mode = #tpu.pipeline_mode<synchronous>, transform_indices = @transform_8, window_bounds = array<i64: 4, 1>}, {transform_indices = @transform_9, window_bounds = array<i64: 4, 512>}]} {
    %c0 = arith.constant 0 : index
    %c0_0 = arith.constant 0 : index
    %0 = vector.load %arg1[%c0, %c0_0] : memref<1x512xi32, #tpu.memory_space<vmem>>, vector<1x512xi32>
    %c0_1 = arith.constant 0 : index
    %c0_2 = arith.constant 0 : index
    %1 = vector.load %arg2[%c0_1, %c0_2] : memref<1x512xi32, #tpu.memory_space<vmem>>, vector<1x512xi32>
    %c16_i32 = arith.constant 16 : i32
    %2 = vector.broadcast %c16_i32 : i32 to vector<1x512xi32>
    %3 = arith.cmpi sge, %0, %2 : vector<1x512xi32>
    %c240_i32 = arith.constant 240 : i32
    %4 = vector.broadcast %c240_i32 : i32 to vector<1x512xi32>
    %5 = arith.cmpi slt, %0, %4 : vector<1x512xi32>
    %c1_i32 = arith.constant 1 : i32
    %6 = vector.broadcast %c1_i32 : i32 to vector<1x512xi32>
    %7 = arith.cmpi sge, %1, %6 : vector<1x512xi32>
    %c15_i32 = arith.constant 15 : i32
    %8 = vector.broadcast %c15_i32 : i32 to vector<1x512xi32>
    %9 = arith.cmpi slt, %1, %8 : vector<1x512xi32>
    %cst = arith.constant 0.000000e+00 : f32
    %10 = vector.broadcast %cst : f32 to vector<4x128xf32>
    %c0_3 = arith.constant 0 : index
    %c0_4 = arith.constant 0 : index
    %11 = vector.load %arg11[%c0_3, %c0_4] : memref<4x768xf32, #tpu.memory_space<vmem>>, vector<4x128xf32>
    tpu.vector_store %arg11[%c0_3, %c0_4], %10 {strides = array<i32>} : memref<4x768xf32, #tpu.memory_space<vmem>>, vector<4x128xf32>,
    %c0_5 = arith.constant 0 : index
    %c640 = arith.constant 640 : index
    %12 = vector.load %arg11[%c0_5, %c640] : memref<4x768xf32, #tpu.memory_space<vmem>>, vector<4x128xf32>
    tpu.vector_store %arg11[%c0_5, %c640], %10 {strides = array<i32>} : memref<4x768xf32, #tpu.memory_space<vmem>>, vector<4x128xf32>,
    %c0_6 = arith.constant 0 : index
    %c0_7 = arith.constant 0 : index
    %13 = vector.load %arg3[%c0_6, %c0_7] : memref<4x512xf32, #tpu.memory_space<vmem>>, vector<4x512xf32>
    %c0_8 = arith.constant 0 : index
    %c128 = arith.constant 128 : index
    %14 = vector.load %arg11[%c0_8, %c128] : memref<4x768xf32, #tpu.memory_space<vmem>>, vector<4x512xf32>
    tpu.vector_store %arg11[%c0_8, %c128], %13 {strides = array<i32>} : memref<4x768xf32, #tpu.memory_space<vmem>>, vector<4x512xf32>,
    %c0_9 = arith.constant 0 : index
    %c111 = arith.constant 111 : index
    %15 = vector.load %arg11[%c0_9, %c111] : memref<4x768xf32, #tpu.memory_space<vmem>>, vector<4x512xf32>
    %16 = arith.andi %3, %7 : vector<1x512xi1>
    %cst_10 = arith.constant 0.000000e+00 : f32
    %17 = vector.shape_cast %16 : vector<1x512xi1> to vector<1x512xi1>
    %18 = vector.broadcast %17 : vector<1x512xi1> to vector<4x512xi1>
    %19 = vector.broadcast %cst_10 : f32 to vector<4x512xf32>
    %20 = arith.select %18, %15, %19 : vector<4x512xi1>, vector<4x512xf32>
    %21 = arith.truncf %20 : vector<4x512xf32> to vector<4x512xbf16>
    %c0_11 = arith.constant 0 : index
    %c0_12 = arith.constant 0 : index
    %22 = vector.load %arg12[%c0_11, %c0_12] : memref<36x512xbf16, #tpu.memory_space<vmem>>, vector<4x512xbf16>
    tpu.vector_store %arg12[%c0_11, %c0_12], %21 {strides = array<i32>} : memref<36x512xbf16, #tpu.memory_space<vmem>>, vector<4x512xbf16>,
    %c0_13 = arith.constant 0 : index
    %c112 = arith.constant 112 : index
    %23 = vector.load %arg11[%c0_13, %c112] : memref<4x768xf32, #tpu.memory_space<vmem>>, vector<4x512xf32>
    %cst_14 = arith.constant 0.000000e+00 : f32
    %24 = vector.shape_cast %3 : vector<1x512xi1> to vector<1x512xi1>
    %25 = vector.broadcast %24 : vector<1x512xi1> to vector<4x512xi1>
    %26 = vector.broadcast %cst_14 : f32 to vector<4x512xf32>
    %27 = arith.select %25, %23, %26 : vector<4x512xi1>, vector<4x512xf32>
    %28 = arith.truncf %27 : vector<4x512xf32> to vector<4x512xbf16>
    %c4 = arith.constant 4 : index
    %c0_15 = arith.constant 0 : index
    %29 = vector.load %arg12[%c4, %c0_15] : memref<36x512xbf16, #tpu.memory_space<vmem>>, vector<4x512xbf16>
    tpu.vector_store %arg12[%c4, %c0_15], %28 {strides = array<i32>} : memref<36x512xbf16, #tpu.memory_space<vmem>>, vector<4x512xbf16>,
    %c0_16 = arith.constant 0 : index
    %c113 = arith.constant 113 : index
    %30 = vector.load %arg11[%c0_16, %c113] : memref<4x768xf32, #tpu.memory_space<vmem>>, vector<4x512xf32>
    %31 = arith.andi %3, %9 : vector<1x512xi1>
    %cst_17 = arith.constant 0.000000e+00 : f32
    %32 = vector.shape_cast %31 : vector<1x512xi1> to vector<1x512xi1>
    %33 = vector.broadcast %32 : vector<1x512xi1> to vector<4x512xi1>
    %34 = vector.broadcast %cst_17 : f32 to vector<4x512xf32>
    %35 = arith.select %33, %30, %34 : vector<4x512xi1>, vector<4x512xf32>
    %36 = arith.truncf %35 : vector<4x512xf32> to vector<4x512xbf16>
    %c8 = arith.constant 8 : index
    %c0_18 = arith.constant 0 : index
    %37 = vector.load %arg12[%c8, %c0_18] : memref<36x512xbf16, #tpu.memory_space<vmem>>, vector<4x512xbf16>
    tpu.vector_store %arg12[%c8, %c0_18], %36 {strides = array<i32>} : memref<36x512xbf16, #tpu.memory_space<vmem>>, vector<4x512xbf16>,
    %c0_19 = arith.constant 0 : index
    %c127 = arith.constant 127 : index
    %38 = vector.load %arg11[%c0_19, %c127] : memref<4x768xf32, #tpu.memory_space<vmem>>, vector<4x512xf32>
    %cst_20 = arith.constant 0.000000e+00 : f32
    %39 = vector.shape_cast %7 : vector<1x512xi1> to vector<1x512xi1>
    %40 = vector.broadcast %39 : vector<1x512xi1> to vector<4x512xi1>
    %41 = vector.broadcast %cst_20 : f32 to vector<4x512xf32>
    %42 = arith.select %40, %38, %41 : vector<4x512xi1>, vector<4x512xf32>
    %43 = arith.truncf %42 : vector<4x512xf32> to vector<4x512xbf16>
    %c12 = arith.constant 12 : index
    %c0_21 = arith.constant 0 : index
    %44 = vector.load %arg12[%c12, %c0_21] : memref<36x512xbf16, #tpu.memory_space<vmem>>, vector<4x512xbf16>
    tpu.vector_store %arg12[%c12, %c0_21], %43 {strides = array<i32>} : memref<36x512xbf16, #tpu.memory_space<vmem>>, vector<4x512xbf16>,
    %45 = arith.truncf %13 : vector<4x512xf32> to vector<4x512xbf16>
    %c16 = arith.constant 16 : index
    %c0_22 = arith.constant 0 : index
    %46 = vector.load %arg12[%c16, %c0_22] : memref<36x512xbf16, #tpu.memory_space<vmem>>, vector<4x512xbf16>
    tpu.vector_store %arg12[%c16, %c0_22], %45 {strides = array<i32>} : memref<36x512xbf16, #tpu.memory_space<vmem>>, vector<4x512xbf16>,
    %c0_23 = arith.constant 0 : index
    %c129 = arith.constant 129 : index
    %47 = vector.load %arg11[%c0_23, %c129] : memref<4x768xf32, #tpu.memory_space<vmem>>, vector<4x512xf32>
    %cst_24 = arith.constant 0.000000e+00 : f32
    %48 = vector.shape_cast %9 : vector<1x512xi1> to vector<1x512xi1>
    %49 = vector.broadcast %48 : vector<1x512xi1> to vector<4x512xi1>
    %50 = vector.broadcast %cst_24 : f32 to vector<4x512xf32>
    %51 = arith.select %49, %47, %50 : vector<4x512xi1>, vector<4x512xf32>
    %52 = arith.truncf %51 : vector<4x512xf32> to vector<4x512xbf16>
    %c20 = arith.constant 20 : index
    %c0_25 = arith.constant 0 : index
    %53 = vector.load %arg12[%c20, %c0_25] : memref<36x512xbf16, #tpu.memory_space<vmem>>, vector<4x512xbf16>
    tpu.vector_store %arg12[%c20, %c0_25], %52 {strides = array<i32>} : memref<36x512xbf16, #tpu.memory_space<vmem>>, vector<4x512xbf16>,
    %c0_26 = arith.constant 0 : index
    %c143 = arith.constant 143 : index
    %54 = vector.load %arg11[%c0_26, %c143] : memref<4x768xf32, #tpu.memory_space<vmem>>, vector<4x512xf32>
    %55 = arith.andi %5, %7 : vector<1x512xi1>
    %cst_27 = arith.constant 0.000000e+00 : f32
    %56 = vector.shape_cast %55 : vector<1x512xi1> to vector<1x512xi1>
    %57 = vector.broadcast %56 : vector<1x512xi1> to vector<4x512xi1>
    %58 = vector.broadcast %cst_27 : f32 to vector<4x512xf32>
    %59 = arith.select %57, %54, %58 : vector<4x512xi1>, vector<4x512xf32>
    %60 = arith.truncf %59 : vector<4x512xf32> to vector<4x512xbf16>
    %c24 = arith.constant 24 : index
    %c0_28 = arith.constant 0 : index
    %61 = vector.load %arg12[%c24, %c0_28] : memref<36x512xbf16, #tpu.memory_space<vmem>>, vector<4x512xbf16>
    tpu.vector_store %arg12[%c24, %c0_28], %60 {strides = array<i32>} : memref<36x512xbf16, #tpu.memory_space<vmem>>, vector<4x512xbf16>,
    %c0_29 = arith.constant 0 : index
    %c144 = arith.constant 144 : index
    %62 = vector.load %arg11[%c0_29, %c144] : memref<4x768xf32, #tpu.memory_space<vmem>>, vector<4x512xf32>
    %cst_30 = arith.constant 0.000000e+00 : f32
    %63 = vector.shape_cast %5 : vector<1x512xi1> to vector<1x512xi1>
    %64 = vector.broadcast %63 : vector<1x512xi1> to vector<4x512xi1>
    %65 = vector.broadcast %cst_30 : f32 to vector<4x512xf32>
    %66 = arith.select %64, %62, %65 : vector<4x512xi1>, vector<4x512xf32>
    %67 = arith.truncf %66 : vector<4x512xf32> to vector<4x512xbf16>
    %c28 = arith.constant 28 : index
    %c0_31 = arith.constant 0 : index
    %68 = vector.load %arg12[%c28, %c0_31] : memref<36x512xbf16, #tpu.memory_space<vmem>>, vector<4x512xbf16>
    tpu.vector_store %arg12[%c28, %c0_31], %67 {strides = array<i32>} : memref<36x512xbf16, #tpu.memory_space<vmem>>, vector<4x512xbf16>,
    %c0_32 = arith.constant 0 : index
    %c145 = arith.constant 145 : index
    %69 = vector.load %arg11[%c0_32, %c145] : memref<4x768xf32, #tpu.memory_space<vmem>>, vector<4x512xf32>
    %70 = arith.andi %5, %9 : vector<1x512xi1>
    %cst_33 = arith.constant 0.000000e+00 : f32
    %71 = vector.shape_cast %70 : vector<1x512xi1> to vector<1x512xi1>
    %72 = vector.broadcast %71 : vector<1x512xi1> to vector<4x512xi1>
    %73 = vector.broadcast %cst_33 : f32 to vector<4x512xf32>
    %74 = arith.select %72, %69, %73 : vector<4x512xi1>, vector<4x512xf32>
    %75 = arith.truncf %74 : vector<4x512xf32> to vector<4x512xbf16>
    %c32 = arith.constant 32 : index
    %c0_34 = arith.constant 0 : index
    %76 = vector.load %arg12[%c32, %c0_34] : memref<36x512xbf16, #tpu.memory_space<vmem>>, vector<4x512xbf16>
    tpu.vector_store %arg12[%c32, %c0_34], %75 {strides = array<i32>} : memref<36x512xbf16, #tpu.memory_space<vmem>>, vector<4x512xbf16>,
    %c0_35 = arith.constant 0 : index
    %c0_36 = arith.constant 0 : index
    %77 = vector.load %arg12[%c0_35, %c0_36] : memref<36x512xbf16, #tpu.memory_space<vmem>>, vector<36x512xbf16>
    %c0_37 = arith.constant 0 : index
    %c0_38 = arith.constant 0 : index
    %78 = vector.load %arg4[%c0_37, %c0_38] : memref<2x36xbf16, #tpu.memory_space<vmem>>, vector<2x36xbf16>
    %cst_39 = arith.constant dense<0.000000e+00> : vector<2x512xf32>
    %79 = tpu.matmul %78, %77, %cst_39 {dimension_numbers = #tpu.dot_dimension_numbers<[1], [0], [0], [1], [0, 0, 1, 1], [], []>} : vector<2x36xbf16>, vector<36x512xbf16>, vector<2x512xf32> -> vector<2x512xf32>
    %c0_40 = arith.constant 0 : index
    %c0_41 = arith.constant 0 : index
    %80 = vector.load %arg5[%c0_40, %c0_41] : memref<2x1xf32, #tpu.memory_space<vmem>>, vector<2x1xf32>
    %81 = vector.broadcast %80 : vector<2x1xf32> to vector<2x512xf32>
    %82 = arith.mulf %79, %81 : vector<2x512xf32>
    %c0_42 = arith.constant 0 : index
    %c0_43 = arith.constant 0 : index
    %83 = vector.load %arg6[%c0_42, %c0_43] : memref<2x1xf32, #tpu.memory_space<vmem>>, vector<2x1xf32>
    %84 = vector.broadcast %83 : vector<2x1xf32> to vector<2x512xf32>
    %85 = arith.addf %82, %84 : vector<2x512xf32>
    %cst_44 = arith.constant 3.000000e+00 : f32
    %86 = vector.broadcast %cst_44 : f32 to vector<2x512xf32>
    %87 = arith.addf %85, %86 : vector<2x512xf32>
    %cst_45 = arith.constant 0.000000e+00 : f32
    %cst_46 = arith.constant 6.000000e+00 : f32
    %88 = vector.broadcast %cst_45 : f32 to vector<2x512xf32>
    %89 = arith.maximumf %88, %87 : vector<2x512xf32>
    %90 = vector.broadcast %cst_46 : f32 to vector<2x512xf32>
    %91 = arith.minimumf %90, %89 : vector<2x512xf32>
    %92 = arith.mulf %85, %91 : vector<2x512xf32>
    %cst_47 = arith.constant 0.166666672 : f32
    %93 = vector.broadcast %cst_47 : f32 to vector<2x512xf32>
    %94 = arith.mulf %92, %93 : vector<2x512xf32>
    %c0_48 = arith.constant 0 : index
    %c128_49 = arith.constant 128 : index
    %95 = vector.load %arg11[%c0_48, %c128_49] : memref<4x768xf32, #tpu.memory_space<vmem>>, vector<2x512xf32>
    tpu.vector_store %arg11[%c0_48, %c128_49], %94 {strides = array<i32>} : memref<4x768xf32, #tpu.memory_space<vmem>>, vector<2x512xf32>,
    %c0_50 = arith.constant 0 : index
    %c111_51 = arith.constant 111 : index
    %96 = vector.load %arg11[%c0_50, %c111_51] : memref<4x768xf32, #tpu.memory_space<vmem>>, vector<2x512xf32>
    %97 = arith.andi %3, %7 : vector<1x512xi1>
    %cst_52 = arith.constant 0.000000e+00 : f32
    %98 = vector.shape_cast %97 : vector<1x512xi1> to vector<1x512xi1>
    %99 = vector.broadcast %98 : vector<1x512xi1> to vector<2x512xi1>
    %100 = vector.broadcast %cst_52 : f32 to vector<2x512xf32>
    %101 = arith.select %99, %96, %100 : vector<2x512xi1>, vector<2x512xf32>
    %102 = arith.truncf %101 : vector<2x512xf32> to vector<2x512xbf16>
    %c0_53 = arith.constant 0 : index
    %c0_54 = arith.constant 0 : index
    %103 = vector.load %arg12[%c0_53, %c0_54] : memref<36x512xbf16, #tpu.memory_space<vmem>>, vector<2x512xbf16>
    tpu.vector_store %arg12[%c0_53, %c0_54], %102 {strides = array<i32>} : memref<36x512xbf16, #tpu.memory_space<vmem>>, vector<2x512xbf16>,
    %c0_55 = arith.constant 0 : index
    %c112_56 = arith.constant 112 : index
    %104 = vector.load %arg11[%c0_55, %c112_56] : memref<4x768xf32, #tpu.memory_space<vmem>>, vector<2x512xf32>
    %cst_57 = arith.constant 0.000000e+00 : f32
    %105 = vector.shape_cast %3 : vector<1x512xi1> to vector<1x512xi1>
    %106 = vector.broadcast %105 : vector<1x512xi1> to vector<2x512xi1>
    %107 = vector.broadcast %cst_57 : f32 to vector<2x512xf32>
    %108 = arith.select %106, %104, %107 : vector<2x512xi1>, vector<2x512xf32>
    %109 = arith.truncf %108 : vector<2x512xf32> to vector<2x512xbf16>
    %c2 = arith.constant 2 : index
    %c0_58 = arith.constant 0 : index
    %110 = vector.load %arg12[%c2, %c0_58] : memref<36x512xbf16, #tpu.memory_space<vmem>>, vector<2x512xbf16>
    tpu.vector_store %arg12[%c2, %c0_58], %109 {strides = array<i32>} : memref<36x512xbf16, #tpu.memory_space<vmem>>, vector<2x512xbf16>,
    %c0_59 = arith.constant 0 : index
    %c113_60 = arith.constant 113 : index
    %111 = vector.load %arg11[%c0_59, %c113_60] : memref<4x768xf32, #tpu.memory_space<vmem>>, vector<2x512xf32>
    %112 = arith.andi %3, %9 : vector<1x512xi1>
    %cst_61 = arith.constant 0.000000e+00 : f32
    %113 = vector.shape_cast %112 : vector<1x512xi1> to vector<1x512xi1>
    %114 = vector.broadcast %113 : vector<1x512xi1> to vector<2x512xi1>
    %115 = vector.broadcast %cst_61 : f32 to vector<2x512xf32>
    %116 = arith.select %114, %111, %115 : vector<2x512xi1>, vector<2x512xf32>
    %117 = arith.truncf %116 : vector<2x512xf32> to vector<2x512xbf16>
    %c4_62 = arith.constant 4 : index
    %c0_63 = arith.constant 0 : index
    %118 = vector.load %arg12[%c4_62, %c0_63] : memref<36x512xbf16, #tpu.memory_space<vmem>>, vector<2x512xbf16>
    tpu.vector_store %arg12[%c4_62, %c0_63], %117 {strides = array<i32>} : memref<36x512xbf16, #tpu.memory_space<vmem>>, vector<2x512xbf16>,
    %c0_64 = arith.constant 0 : index
    %c127_65 = arith.constant 127 : index
    %119 = vector.load %arg11[%c0_64, %c127_65] : memref<4x768xf32, #tpu.memory_space<vmem>>, vector<2x512xf32>
    %cst_66 = arith.constant 0.000000e+00 : f32
    %120 = vector.shape_cast %7 : vector<1x512xi1> to vector<1x512xi1>
    %121 = vector.broadcast %120 : vector<1x512xi1> to vector<2x512xi1>
    %122 = vector.broadcast %cst_66 : f32 to vector<2x512xf32>
    %123 = arith.select %121, %119, %122 : vector<2x512xi1>, vector<2x512xf32>
    %124 = arith.truncf %123 : vector<2x512xf32> to vector<2x512xbf16>
    %c6 = arith.constant 6 : index
    %c0_67 = arith.constant 0 : index
    %125 = vector.load %arg12[%c6, %c0_67] : memref<36x512xbf16, #tpu.memory_space<vmem>>, vector<2x512xbf16>
    tpu.vector_store %arg12[%c6, %c0_67], %124 {strides = array<i32>} : memref<36x512xbf16, #tpu.memory_space<vmem>>, vector<2x512xbf16>,
    %126 = arith.truncf %94 : vector<2x512xf32> to vector<2x512xbf16>
    %c8_68 = arith.constant 8 : index
    %c0_69 = arith.constant 0 : index
    %127 = vector.load %arg12[%c8_68, %c0_69] : memref<36x512xbf16, #tpu.memory_space<vmem>>, vector<2x512xbf16>
    tpu.vector_store %arg12[%c8_68, %c0_69], %126 {strides = array<i32>} : memref<36x512xbf16, #tpu.memory_space<vmem>>, vector<2x512xbf16>,
    %c0_70 = arith.constant 0 : index
    %c129_71 = arith.constant 129 : index
    %128 = vector.load %arg11[%c0_70, %c129_71] : memref<4x768xf32, #tpu.memory_space<vmem>>, vector<2x512xf32>
    %cst_72 = arith.constant 0.000000e+00 : f32
    %129 = vector.shape_cast %9 : vector<1x512xi1> to vector<1x512xi1>
    %130 = vector.broadcast %129 : vector<1x512xi1> to vector<2x512xi1>
    %131 = vector.broadcast %cst_72 : f32 to vector<2x512xf32>
    %132 = arith.select %130, %128, %131 : vector<2x512xi1>, vector<2x512xf32>
    %133 = arith.truncf %132 : vector<2x512xf32> to vector<2x512xbf16>
    %c10 = arith.constant 10 : index
    %c0_73 = arith.constant 0 : index
    %134 = vector.load %arg12[%c10, %c0_73] : memref<36x512xbf16, #tpu.memory_space<vmem>>, vector<2x512xbf16>
    tpu.vector_store %arg12[%c10, %c0_73], %133 {strides = array<i32>} : memref<36x512xbf16, #tpu.memory_space<vmem>>, vector<2x512xbf16>,
    %c0_74 = arith.constant 0 : index
    %c143_75 = arith.constant 143 : index
    %135 = vector.load %arg11[%c0_74, %c143_75] : memref<4x768xf32, #tpu.memory_space<vmem>>, vector<2x512xf32>
    %136 = arith.andi %5, %7 : vector<1x512xi1>
    %cst_76 = arith.constant 0.000000e+00 : f32
    %137 = vector.shape_cast %136 : vector<1x512xi1> to vector<1x512xi1>
    %138 = vector.broadcast %137 : vector<1x512xi1> to vector<2x512xi1>
    %139 = vector.broadcast %cst_76 : f32 to vector<2x512xf32>
    %140 = arith.select %138, %135, %139 : vector<2x512xi1>, vector<2x512xf32>
    %141 = arith.truncf %140 : vector<2x512xf32> to vector<2x512xbf16>
    %c12_77 = arith.constant 12 : index
    %c0_78 = arith.constant 0 : index
    %142 = vector.load %arg12[%c12_77, %c0_78] : memref<36x512xbf16, #tpu.memory_space<vmem>>, vector<2x512xbf16>
    tpu.vector_store %arg12[%c12_77, %c0_78], %141 {strides = array<i32>} : memref<36x512xbf16, #tpu.memory_space<vmem>>, vector<2x512xbf16>,
    %c0_79 = arith.constant 0 : index
    %c144_80 = arith.constant 144 : index
    %143 = vector.load %arg11[%c0_79, %c144_80] : memref<4x768xf32, #tpu.memory_space<vmem>>, vector<2x512xf32>
    %cst_81 = arith.constant 0.000000e+00 : f32
    %144 = vector.shape_cast %5 : vector<1x512xi1> to vector<1x512xi1>
    %145 = vector.broadcast %144 : vector<1x512xi1> to vector<2x512xi1>
    %146 = vector.broadcast %cst_81 : f32 to vector<2x512xf32>
    %147 = arith.select %145, %143, %146 : vector<2x512xi1>, vector<2x512xf32>
    %148 = arith.truncf %147 : vector<2x512xf32> to vector<2x512xbf16>
    %c14 = arith.constant 14 : index
    %c0_82 = arith.constant 0 : index
    %149 = vector.load %arg12[%c14, %c0_82] : memref<36x512xbf16, #tpu.memory_space<vmem>>, vector<2x512xbf16>
    tpu.vector_store %arg12[%c14, %c0_82], %148 {strides = array<i32>} : memref<36x512xbf16, #tpu.memory_space<vmem>>, vector<2x512xbf16>,
    %c0_83 = arith.constant 0 : index
    %c145_84 = arith.constant 145 : index
    %150 = vector.load %arg11[%c0_83, %c145_84] : memref<4x768xf32, #tpu.memory_space<vmem>>, vector<2x512xf32>
    %151 = arith.andi %5, %9 : vector<1x512xi1>
    %cst_85 = arith.constant 0.000000e+00 : f32
    %152 = vector.shape_cast %151 : vector<1x512xi1> to vector<1x512xi1>
    %153 = vector.broadcast %152 : vector<1x512xi1> to vector<2x512xi1>
    %154 = vector.broadcast %cst_85 : f32 to vector<2x512xf32>
    %155 = arith.select %153, %150, %154 : vector<2x512xi1>, vector<2x512xf32>
    %156 = arith.truncf %155 : vector<2x512xf32> to vector<2x512xbf16>
    %c16_86 = arith.constant 16 : index
    %c0_87 = arith.constant 0 : index
    %157 = vector.load %arg12[%c16_86, %c0_87] : memref<36x512xbf16, #tpu.memory_space<vmem>>, vector<2x512xbf16>
    tpu.vector_store %arg12[%c16_86, %c0_87], %156 {strides = array<i32>} : memref<36x512xbf16, #tpu.memory_space<vmem>>, vector<2x512xbf16>,
    %c0_88 = arith.constant 0 : index
    %c0_89 = arith.constant 0 : index
    %158 = vector.load %arg12[%c0_88, %c0_89] : memref<36x512xbf16, #tpu.memory_space<vmem>>, vector<18x512xbf16>
    %c0_90 = arith.constant 0 : index
    %c0_91 = arith.constant 0 : index
    %159 = vector.load %arg7[%c0_90, %c0_91] : memref<4x18xbf16, #tpu.memory_space<vmem>>, vector<4x18xbf16>
    %cst_92 = arith.constant dense<0.000000e+00> : vector<4x512xf32>
    %160 = tpu.matmul %159, %158, %cst_92 {dimension_numbers = #tpu.dot_dimension_numbers<[1], [0], [0], [1], [0, 0, 1, 1], [], []>} : vector<4x18xbf16>, vector<18x512xbf16>, vector<4x512xf32> -> vector<4x512xf32>
    %c0_93 = arith.constant 0 : index
    %c0_94 = arith.constant 0 : index
    %161 = vector.load %arg8[%c0_93, %c0_94] : memref<4x1xf32, #tpu.memory_space<vmem>>, vector<4x1xf32>
    %162 = vector.broadcast %161 : vector<4x1xf32> to vector<4x512xf32>
    %163 = arith.mulf %160, %162 : vector<4x512xf32>
    %c0_95 = arith.constant 0 : index
    %c0_96 = arith.constant 0 : index
    %164 = vector.load %arg9[%c0_95, %c0_96] : memref<4x1xf32, #tpu.memory_space<vmem>>, vector<4x1xf32>
    %165 = vector.broadcast %164 : vector<4x1xf32> to vector<4x512xf32>
    %166 = arith.addf %163, %165 : vector<4x512xf32>
    %cst_97 = arith.constant 3.000000e+00 : f32
    %167 = vector.broadcast %cst_97 : f32 to vector<4x512xf32>
    %168 = arith.addf %166, %167 : vector<4x512xf32>
    %cst_98 = arith.constant 0.000000e+00 : f32
    %cst_99 = arith.constant 6.000000e+00 : f32
    %169 = vector.broadcast %cst_98 : f32 to vector<4x512xf32>
    %170 = arith.maximumf %169, %168 : vector<4x512xf32>
    %171 = vector.broadcast %cst_99 : f32 to vector<4x512xf32>
    %172 = arith.minimumf %171, %170 : vector<4x512xf32>
    %173 = arith.mulf %166, %172 : vector<4x512xf32>
    %cst_100 = arith.constant 0.166666672 : f32
    %174 = vector.broadcast %cst_100 : f32 to vector<4x512xf32>
    %175 = arith.mulf %173, %174 : vector<4x512xf32>
    %176 = arith.addf %175, %13 : vector<4x512xf32>
    %c0_101 = arith.constant 0 : index
    %c0_102 = arith.constant 0 : index
    %177 = vector.load %arg10[%c0_101, %c0_102] : memref<4x512xf32, #tpu.memory_space<vmem>>, vector<4x512xf32>
    tpu.vector_store %arg10[%c0_101, %c0_102], %176 {strides = array<i32>} : memref<4x512xf32, #tpu.memory_space<vmem>>, vector<4x512xf32>,
    return
  }
  func.func @transform_0(%arg0: i32) -> (i32, i32) {
    %c0_i32 = arith.constant 0 : i32
    %c0_i32_0 = arith.constant 0 : i32
    %c0_i32_1 = arith.constant 0 : i32
    return %c0_i32, %c0_i32_0 : i32, i32
  }
  func.func @transform_1(%arg0: i32) -> (i32, i32) {
    %c0_i32 = arith.constant 0 : i32
    %c0_i32_0 = arith.constant 0 : i32
    %c0_i32_1 = arith.constant 0 : i32
    return %c0_i32, %c0_i32_0 : i32, i32
  }
  func.func @transform_2(%arg0: i32) -> (i32, i32) {
    %c0_i32 = arith.constant 0 : i32
    %c0_i32_0 = arith.constant 0 : i32
    return %c0_i32, %arg0 : i32, i32
  }
  func.func @transform_3(%arg0: i32) -> (i32, i32) {
    %c0_i32 = arith.constant 0 : i32
    %c0_i32_0 = arith.constant 0 : i32
    %c0_i32_1 = arith.constant 0 : i32
    return %c0_i32, %c0_i32_0 : i32, i32
  }
  func.func @transform_4(%arg0: i32) -> (i32, i32) {
    %c0_i32 = arith.constant 0 : i32
    %c0_i32_0 = arith.constant 0 : i32
    %c0_i32_1 = arith.constant 0 : i32
    return %c0_i32, %c0_i32_0 : i32, i32
  }
  func.func @transform_5(%arg0: i32) -> (i32, i32) {
    %c0_i32 = arith.constant 0 : i32
    %c0_i32_0 = arith.constant 0 : i32
    %c0_i32_1 = arith.constant 0 : i32
    return %c0_i32, %c0_i32_0 : i32, i32
  }
  func.func @transform_6(%arg0: i32) -> (i32, i32) {
    %c0_i32 = arith.constant 0 : i32
    %c0_i32_0 = arith.constant 0 : i32
    %c0_i32_1 = arith.constant 0 : i32
    return %c0_i32, %c0_i32_0 : i32, i32
  }
  func.func @transform_7(%arg0: i32) -> (i32, i32) {
    %c0_i32 = arith.constant 0 : i32
    %c0_i32_0 = arith.constant 0 : i32
    %c0_i32_1 = arith.constant 0 : i32
    return %c0_i32, %c0_i32_0 : i32, i32
  }
  func.func @transform_8(%arg0: i32) -> (i32, i32) {
    %c0_i32 = arith.constant 0 : i32
    %c0_i32_0 = arith.constant 0 : i32
    %c0_i32_1 = arith.constant 0 : i32
    return %c0_i32, %c0_i32_0 : i32, i32
  }
  func.func @transform_9(%arg0: i32) -> (i32, i32) {
    %c0_i32 = arith.constant 0 : i32
    %c0_i32_0 = arith.constant 0 : i32
    return %c0_i32, %arg0 : i32, i32
  }
}

</mosaic_0001>

<llo_original>
// kernel: bottleneck_forward.1
$region0: #{bottleneck_forward.1}
  #allocation0 [shape = 'u32[]', space=smem, size = 0x4, offset = 0x4, fixed_abs, tag = 'smem constant byte address 0x4 - core index']
  #allocation1 [shape = 'u32[144,128]{1,0:T(1,128)}', space=vmem, size = 0x12000, scoped, tag = 'internal scratch']
  #allocation2 [shape = 'f32[4,768]{1,0:T(4,128)}', space=vmem, size = 0x3000, scoped, tag = 'scratch operand']
  #allocation3 [shape = 'bf16[36,512]{1,0:T(8,128)(2,1)}', space=vmem, size = 0xa000, scoped, tag = 'scratch operand']
  %s0 = inlined_call_operand.vmem [shape: s32[1,512], index: 0, kind: input, shape index: {}]
  %s1 = inlined_call_operand.vmem [shape: s32[1,512], index: 1, kind: input, shape index: {}]
  %s2 = inlined_call_operand.vmem [shape: f32[4,512], index: 2, kind: input, shape index: {}]
  %s3 = inlined_call_operand.vmem [shape: bf16[2,36], index: 3, kind: input, shape index: {}]
  %s4 = inlined_call_operand.vmem [shape: f32[2,1], index: 4, kind: input, shape index: {}]
  %s5 = inlined_call_operand.vmem [shape: f32[2,1], index: 5, kind: input, shape index: {}]
  %s6 = inlined_call_operand.vmem [shape: bf16[4,18], index: 6, kind: input, shape index: {}]
  %s7 = inlined_call_operand.vmem [shape: f32[4,1], index: 7, kind: input, shape index: {}]
  %s8 = inlined_call_operand.vmem [shape: f32[4,1], index: 8, kind: input, shape index: {}]
  %s9 = inlined_call_operand.vmem [shape: f32[4,512], index: 9, kind: output, shape index: {}]
  %s10 = sld [smem:[#allocation0]]
  $region46: #{bottleneck_forward.1} parent=0
    _
  %s12 = ssub.s32 1, %s10
  %s13 = scalar_select 0, %s12, %s10
  // Predicated region
  $region2: #{bottleneck_forward.1} parent=0 // pred_check
    _
  $region3: #{bottleneck_forward.1} parent=0 // pred_check_branch
    %15 = sbr.rel (0) target = $region5
  $region4: #{bottleneck_forward.1} parent=0 // pred_region
    _
  $region5: #{bottleneck_forward.1} parent=0 // pred_fallthru
    _
  // Predicated region
  $region6: #{bottleneck_forward.1} parent=0 // pred_check
    _
  $region7: #{bottleneck_forward.1} parent=0 // pred_check_branch
    %17 = sbr.rel (0) target = $region9
  $region8: #{bottleneck_forward.1} parent=0 // pred_region
    _
  $region9: #{bottleneck_forward.1} parent=0 // pred_fallthru
    _
  // Predicated region
  $region10: #{bottleneck_forward.1} parent=0 // pred_check
    _
  $region11: #{bottleneck_forward.1} parent=0 // pred_check_branch
    %19 = sbr.rel (0) target = $region13
  $region12: #{bottleneck_forward.1} parent=0 // pred_region
    _
  $region13: #{bottleneck_forward.1} parent=0 // pred_fallthru
    _
  // Predicated region
  $region14: #{bottleneck_forward.1} parent=0 // pred_check
    _
  $region15: #{bottleneck_forward.1} parent=0 // pred_check_branch
    %21 = sbr.rel (0) target = $region17
  $region16: #{bottleneck_forward.1} parent=0 // pred_region
    _
  $region17: #{bottleneck_forward.1} parent=0 // pred_fallthru
    _
  // Predicated region
  $region18: #{bottleneck_forward.1} parent=0 // pred_check
    _
  $region19: #{bottleneck_forward.1} parent=0 // pred_check_branch
    %23 = sbr.rel (0) target = $region21
  $region20: #{bottleneck_forward.1} parent=0 // pred_region
    _
  $region21: #{bottleneck_forward.1} parent=0 // pred_fallthru
    _
  // Predicated region
  $region22: #{bottleneck_forward.1} parent=0 // pred_check
    _
  $region23: #{bottleneck_forward.1} parent=0 // pred_check_branch
    %25 = sbr.rel (0) target = $region25
  $region24: #{bottleneck_forward.1} parent=0 // pred_region
    _
  $region25: #{bottleneck_forward.1} parent=0 // pred_fallthru
    _
  // Predicated region
  $region26: #{bottleneck_forward.1} parent=0 // pred_check
    _
  $region27: #{bottleneck_forward.1} parent=0 // pred_check_branch
    %27 = sbr.rel (0) target = $region29
  $region28: #{bottleneck_forward.1} parent=0 // pred_region
    _
  $region29: #{bottleneck_forward.1} parent=0 // pred_fallthru
    _
  // Predicated region
  $region30: #{bottleneck_forward.1} parent=0 // pred_check
    _
  $region31: #{bottleneck_forward.1} parent=0 // pred_check_branch
    %29 = sbr.rel (0) target = $region33
  $region32: #{bottleneck_forward.1} parent=0 // pred_region
    _
  $region33: #{bottleneck_forward.1} parent=0 // pred_fallthru
    _
  // Predicated region
  $region34: #{bottleneck_forward.1} parent=0 // pred_check
    _
  $region35: #{bottleneck_forward.1} parent=0 // pred_check_branch
    %31 = sbr.rel (0) target = $region37
  $region36: #{bottleneck_forward.1} parent=0 // pred_region
    _
  $region37: #{bottleneck_forward.1} parent=0 // pred_fallthru
    _
  %v33 = vld [vmem:[%s0] sm:$0xf]
  %v34 = vld [vmem:[%s1] sm:$0xf]
  %vm35 = vcmp.ge.s32.totalorder %v33, 16
  %vm36 = vcmp.lt.s32.totalorder %v33, 240
  %vm37 = vcmp.ge.s32.totalorder %v34, 1
  %vm38 = vcmp.lt.s32.totalorder %v34, 15
  %39 = vst [vmem:[#allocation2] sm:$0xf] 0.0
  %40 = vst [vmem:[#allocation2 + $0x14] sm:$0xf] 0.0
  %v41 = vld [vmem:[%s2] sm:$0xff]
  %v42 = vld [vmem:[%s2 + $0x8] sm:$0xff]
  %43 = vst [vmem:[#allocation2 + $0x4] sm:$0xff] %v41
  %44 = vst [vmem:[#allocation2 + $0xc] sm:$0xff] %v42
  %v45 = vld [vmem:[#allocation2] sm:$0xff]
  %v46 = vld [vmem:[#allocation2 + $0x8] sm:$0xff]
  %v47 = vld [vmem:[#allocation2 + $0x10] sm:$0xf]
  %vm48 = vmand %vm35, %vm37
  %v49 = vsel %vm48, 1, 0
  %v50 = vlaneseq
  %v51 = vshrl.u32 %v50, 7
  %v52 = vsub.s32 0, %v51
  %v53 = vrot.slane %v49, %v52
  %v54 = vlaneseq
  %v55 = vshrl.u32 %v54, 7
  %v56 = vsub.s32 1, %v55
  %v57 = vrot.slane %v49, %v56
  %v58 = vlaneseq
  %v59 = vshrl.u32 %v58, 7
  %v60 = vsub.s32 2, %v59
  %v61 = vrot.slane %v49, %v60
  %v62 = vlaneseq
  %v63 = vshrl.u32 %v62, 7
  %v64 = vsub.s32 3, %v63
  %v65 = vrot.slane %v49, %v64
  %vm66 = vcmp.eq.s32.totalorder %v53, 1
  %vm67 = vcmp.eq.s32.totalorder %v57, 1
  %vm68 = vcmp.eq.s32.totalorder %v61, 1
  %vm69 = vcmp.eq.s32.totalorder %v65, 1
  %v73 = vcombine.high %v45, %v45
  %v74 = vcombine.high %v46, %v46
  %75 = vrot.lane.b32.xlu0 %v45, 17
  %v76 = vpop.permute.xlu0 %75
  %77 = vrot.lane.b32.xlu0 %v73, 17
  %v78 = vpop.permute.xlu0 %77
  %79 = vrot.lane.b32.xlu0 %v46, 17
  %v80 = vpop.permute.xlu0 %79
  %81 = vrot.lane.b32.xlu0 %v74, 17
  %v82 = vpop.permute.xlu0 %81
  %83 = vrot.lane.b32.xlu0 %v47, 17
  %v84 = vpop.permute.xlu0 %83
  %vm85 = vcmask 138240
  %v86 = vsel %vm85, %v76, %v78
  %v87 = vsel %vm85, %v78, %v80
  %v88 = vsel %vm85, %v80, %v82
  %v89 = vsel %vm85, %v82, %v84
  %v94 = vsel %vm66, %v86, 0.0
  %v95 = vsel %vm67, %v87, 0.0
  %v96 = vsel %vm68, %v88, 0.0
  %v97 = vsel %vm69, %v89, 0.0
  %v98 = vpack.c.bf16 %v94, %v94
  %v99 = vpack.c.bf16 %v95, %v95
  %v100 = vpack.c.bf16 %v96, %v96
  %v101 = vpack.c.bf16 %v97, %v97
  %v106 = vunpack.c.l.b16 %v98
  %v107 = vunpack.c.l.b16 %v99
  %v108 = vunpack.c.l.b16 %v100
  %v109 = vunpack.c.l.b16 %v101
  %v110 = vpack.c.b16 %v107, %v106
  %v111 = vpack.c.b16 %v109, %v108
  %114 = vst [vmem:[#allocation3] sm:$0x33] %v110
  %115 = vst [vmem:[#allocation3 + $0x8] sm:$0x33] %v111
  %v116 = vld [vmem:[#allocation2] sm:$0xff]
  %v117 = vld [vmem:[#allocation2 + $0x8] sm:$0xff]
  %v118 = vld [vmem:[#allocation2 + $0x10] sm:$0xf]
  %v119 = vsel %vm35, 1, 0
  %v120 = vlaneseq
  %v121 = vshrl.u32 %v120, 7
  %v122 = vsub.s32 0, %v121
  %v123 = vrot.slane %v119, %v122
  %v124 = vlaneseq
  %v125 = vshrl.u32 %v124, 7
  %v126 = vsub.s32 1, %v125
  %v127 = vrot.slane %v119, %v126
  %v128 = vlaneseq
  %v129 = vshrl.u32 %v128, 7
  %v130 = vsub.s32 2, %v129
  %v131 = vrot.slane %v119, %v130
  %v132 = vlaneseq
  %v133 = vshrl.u32 %v132, 7
  %v134 = vsub.s32 3, %v133
  %v135 = vrot.slane %v119, %v134
  %vm136 = vcmp.eq.s32.totalorder %v123, 1
  %vm137 = vcmp.eq.s32.totalorder %v127, 1
  %vm138 = vcmp.eq.s32.totalorder %v131, 1
  %vm139 = vcmp.eq.s32.totalorder %v135, 1
  %v143 = vcombine.high %v116, %v116
  %v144 = vcombine.high %v117, %v117
  %145 = vrot.lane.b32.xlu0 %v116, 16
  %v146 = vpop.permute.xlu0 %145
  %147 = vrot.lane.b32.xlu0 %v143, 16
  %v148 = vpop.permute.xlu0 %147
  %149 = vrot.lane.b32.xlu0 %v117, 16
  %v150 = vpop.permute.xlu0 %149
  %151 = vrot.lane.b32.xlu0 %v144, 16
  %v152 = vpop.permute.xlu0 %151
  %153 = vrot.lane.b32.xlu0 %v118, 16
  %v154 = vpop.permute.xlu0 %153
  %vm155 = vcmask 130048
  %v156 = vsel %vm155, %v146, %v148
  %v157 = vsel %vm155, %v148, %v150
  %v158 = vsel %vm155, %v150, %v152
  %v159 = vsel %vm155, %v152, %v154
  %v164 = vsel %vm136, %v156, 0.0
  %v165 = vsel %vm137, %v157, 0.0
  %v166 = vsel %vm138, %v158, 0.0
  %v167 = vsel %vm139, %v159, 0.0
  %v168 = vpack.c.bf16 %v164, %v164
  %v169 = vpack.c.bf16 %v165, %v165
  %v170 = vpack.c.bf16 %v166, %v166
  %v171 = vpack.c.bf16 %v167, %v167
  %v176 = vunpack.c.l.b16 %v168
  %v177 = vunpack.c.l.b16 %v169
  %v178 = vunpack.c.l.b16 %v170
  %v179 = vunpack.c.l.b16 %v171
  %v180 = vpack.c.b16 %v177, %v176
  %v181 = vpack.c.b16 %v179, %v178
  %v182 = vrot.slane %v180, 6
  %v183 = vrot.slane %v181, 6
  %186 = vst [vmem:[#allocation3] sm:$0xcc] %v182
  %187 = vst [vmem:[#allocation3 + $0x8] sm:$0xcc] %v183
  %v188 = vld [vmem:[#allocation2] sm:$0xff]
  %v189 = vld [vmem:[#allocation2 + $0x8] sm:$0xff]
  %v190 = vld [vmem:[#allocation2 + $0x10] sm:$0xf]
  %vm191 = vmand %vm35, %vm38
  %v192 = vsel %vm191, 1, 0
  %v193 = vlaneseq
  %v194 = vshrl.u32 %v193, 7
  %v195 = vsub.s32 0, %v194
  %v196 = vrot.slane %v192, %v195
  %v197 = vlaneseq
  %v198 = vshrl.u32 %v197, 7
  %v199 = vsub.s32 1, %v198
  %v200 = vrot.slane %v192, %v199
  %v201 = vlaneseq
  %v202 = vshrl.u32 %v201, 7
  %v203 = vsub.s32 2, %v202
  %v204 = vrot.slane %v192, %v203
  %v205 = vlaneseq
  %v206 = vshrl.u32 %v205, 7
  %v207 = vsub.s32 3, %v206
  %v208 = vrot.slane %v192, %v207
  %vm209 = vcmp.eq.s32.totalorder %v196, 1
  %vm210 = vcmp.eq.s32.totalorder %v200, 1
  %vm211 = vcmp.eq.s32.totalorder %v204, 1
  %vm212 = vcmp.eq.s32.totalorder %v208, 1
  %v216 = vcombine.high %v188, %v188
  %v217 = vcombine.high %v189, %v189
  %218 = vrot.lane.b32.xlu0 %v188, 15
  %v219 = vpop.permute.xlu0 %218
  %220 = vrot.lane.b32.xlu0 %v216, 15
  %v221 = vpop.permute.xlu0 %220
  %222 = vrot.lane.b32.xlu0 %v189, 15
  %v223 = vpop.permute.xlu0 %222
  %224 = vrot.lane.b32.xlu0 %v217, 15
  %v225 = vpop.permute.xlu0 %224
  %226 = vrot.lane.b32.xlu0 %v190, 15
  %v227 = vpop.permute.xlu0 %226
  %vm228 = vcmask 121856
  %v229 = vsel %vm228, %v219, %v221
  %v230 = vsel %vm228, %v221, %v223
  %v231 = vsel %vm228, %v223, %v225
  %v232 = vsel %vm228, %v225, %v227
  %v237 = vsel %vm209, %v229, 0.0
  %v238 = vsel %vm210, %v230, 0.0
  %v239 = vsel %vm211, %v231, 0.0
  %v240 = vsel %vm212, %v232, 0.0
  %v241 = vpack.c.bf16 %v237, %v237
  %v242 = vpack.c.bf16 %v238, %v238
  %v243 = vpack.c.bf16 %v239, %v239
  %v244 = vpack.c.bf16 %v240, %v240
  %v249 = vunpack.c.l.b16 %v241
  %v250 = vunpack.c.l.b16 %v242
  %v251 = vunpack.c.l.b16 %v243
  %v252 = vunpack.c.l.b16 %v244
  %v253 = vpack.c.b16 %v250, %v249
  %v254 = vpack.c.b16 %v252, %v251
  %257 = vst [vmem:[#allocation3 + $0x10] sm:$0x33] %v253
  %258 = vst [vmem:[#allocation3 + $0x18] sm:$0x33] %v254
  %v259 = vld [vmem:[#allocation2] sm:$0xff]
  %v260 = vld [vmem:[#allocation2 + $0x8] sm:$0xff]
  %v261 = vld [vmem:[#allocation2 + $0x10] sm:$0xf]
  %v262 = vsel %vm37, 1, 0
  %v263 = vlaneseq
  %v264 = vshrl.u32 %v263, 7
  %v265 = vsub.s32 0, %v264
  %v266 = vrot.slane %v262, %v265
  %v267 = vlaneseq
  %v268 = vshrl.u32 %v267, 7
  %v269 = vsub.s32 1, %v268
  %v270 = vrot.slane %v262, %v269
  %v271 = vlaneseq
  %v272 = vshrl.u32 %v271, 7
  %v273 = vsub.s32 2, %v272
  %v274 = vrot.slane %v262, %v273
  %v275 = vlaneseq
  %v276 = vshrl.u32 %v275, 7
  %v277 = vsub.s32 3, %v276
  %v278 = vrot.slane %v262, %v277
  %vm279 = vcmp.eq.s32.totalorder %v266, 1
  %vm280 = vcmp.eq.s32.totalorder %v270, 1
  %vm281 = vcmp.eq.s32.totalorder %v274, 1
  %vm282 = vcmp.eq.s32.totalorder %v278, 1
  %v286 = vcombine.high %v259, %v259
  %v287 = vcombine.high %v260, %v260
  %288 = vrot.lane.b32.xlu0 %v259, 1
  %v289 = vpop.permute.xlu0 %288
  %290 = vrot.lane.b32.xlu0 %v286, 1
  %v291 = vpop.permute.xlu0 %290
  %292 = vrot.lane.b32.xlu0 %v260, 1
  %v293 = vpop.permute.xlu0 %292
  %294 = vrot.lane.b32.xlu0 %v287, 1
  %v295 = vpop.permute.xlu0 %294
  %296 = vrot.lane.b32.xlu0 %v261, 1
  %v297 = vpop.permute.xlu0 %296
  %vm298 = vcmask 7168
  %v299 = vsel %vm298, %v289, %v291
  %v300 = vsel %vm298, %v291, %v293
  %v301 = vsel %vm298, %v293, %v295
  %v302 = vsel %vm298, %v295, %v297
  %v307 = vsel %vm279, %v299, 0.0
  %v308 = vsel %vm280, %v300, 0.0
  %v309 = vsel %vm281, %v301, 0.0
  %v310 = vsel %vm282, %v302, 0.0
  %v311 = vpack.c.bf16 %v307, %v307
  %v312 = vpack.c.bf16 %v308, %v308
  %v313 = vpack.c.bf16 %v309, %v309
  %v314 = vpack.c.bf16 %v310, %v310
  %v319 = vunpack.c.l.b16 %v311
  %v320 = vunpack.c.l.b16 %v312
  %v321 = vunpack.c.l.b16 %v313
  %v322 = vunpack.c.l.b16 %v314
  %v323 = vpack.c.b16 %v320, %v319
  %v324 = vpack.c.b16 %v322, %v321
  %v325 = vrot.slane %v323, 6
  %v326 = vrot.slane %v324, 6
  %329 = vst [vmem:[#allocation3 + $0x10] sm:$0xcc] %v325
  %330 = vst [vmem:[#allocation3 + $0x18] sm:$0xcc] %v326
  %v333 = vcombine.high %v41, %v41
  %v334 = vcombine.high %v42, %v42
  %v337 = vpack.c.bf16 %v41, %v41
  %v338 = vpack.c.bf16 %v333, %v333
  %v339 = vpack.c.bf16 %v42, %v42
  %v340 = vpack.c.bf16 %v334, %v334
  %v345 = vunpack.c.l.b16 %v337
  %v346 = vunpack.c.l.b16 %v338
  %v347 = vunpack.c.l.b16 %v339
  %v348 = vunpack.c.l.b16 %v340
  %v349 = vpack.c.b16 %v346, %v345
  %v350 = vpack.c.b16 %v348, %v347
  %353 = vst [vmem:[#allocation3 + $0x20] sm:$0x33] %v349
  %354 = vst [vmem:[#allocation3 + $0x28] sm:$0x33] %v350
  %v355 = vld [vmem:[#allocation2 + $0x4] sm:$0xff]
  %v356 = vld [vmem:[#allocation2 + $0xc] sm:$0xff]
  %v357 = vld [vmem:[#allocation2 + $0x14] sm:$0xf]
  %v358 = vsel %vm38, 1, 0
  %v359 = vlaneseq
  %v360 = vshrl.u32 %v359, 7
  %v361 = vsub.s32 0, %v360
  %v362 = vrot.slane %v358, %v361
  %v363 = vlaneseq
  %v364 = vshrl.u32 %v363, 7
  %v365 = vsub.s32 1, %v364
  %v366 = vrot.slane %v358, %v365
  %v367 = vlaneseq
  %v368 = vshrl.u32 %v367, 7
  %v369 = vsub.s32 2, %v368
  %v370 = vrot.slane %v358, %v369
  %v371 = vlaneseq
  %v372 = vshrl.u32 %v371, 7
  %v373 = vsub.s32 3, %v372
  %v374 = vrot.slane %v358, %v373
  %vm375 = vcmp.eq.s32.totalorder %v362, 1
  %vm376 = vcmp.eq.s32.totalorder %v366, 1
  %vm377 = vcmp.eq.s32.totalorder %v370, 1
  %vm378 = vcmp.eq.s32.totalorder %v374, 1
  %v382 = vcombine.high %v355, %v355
  %v383 = vcombine.high %v356, %v356
  %384 = vrot.lane.b32.xlu0 %v355, 127
  %v385 = vpop.permute.xlu0 %384
  %386 = vrot.lane.b32.xlu0 %v382, 127
  %v387 = vpop.permute.xlu0 %386
  %388 = vrot.lane.b32.xlu0 %v356, 127
  %v389 = vpop.permute.xlu0 %388
  %390 = vrot.lane.b32.xlu0 %v383, 127
  %v391 = vpop.permute.xlu0 %390
  %392 = vrot.lane.b32.xlu0 %v357, 127
  %v393 = vpop.permute.xlu0 %392
  %vm394 = vcmask 1039360
  %v395 = vsel %vm394, %v385, %v387
  %v396 = vsel %vm394, %v387, %v389
  %v397 = vsel %vm394, %v389, %v391
  %v398 = vsel %vm394, %v391, %v393
  %v403 = vsel %vm375, %v395, 0.0
  %v404 = vsel %vm376, %v396, 0.0
  %v405 = vsel %vm377, %v397, 0.0
  %v406 = vsel %vm378, %v398, 0.0
  %v407 = vpack.c.bf16 %v403, %v403
  %v408 = vpack.c.bf16 %v404, %v404
  %v409 = vpack.c.bf16 %v405, %v405
  %v410 = vpack.c.bf16 %v406, %v406
  %v415 = vunpack.c.l.b16 %v407
  %v416 = vunpack.c.l.b16 %v408
  %v417 = vunpack.c.l.b16 %v409
  %v418 = vunpack.c.l.b16 %v410
  %v419 = vpack.c.b16 %v416, %v415
  %v420 = vpack.c.b16 %v418, %v417
  %v421 = vrot.slane %v419, 6
  %v422 = vrot.slane %v420, 6
  %425 = vst [vmem:[#allocation3 + $0x20] sm:$0xcc] %v421
  %426 = vst [vmem:[#allocation3 + $0x28] sm:$0xcc] %v422
  %v427 = vld [vmem:[#allocation2 + $0x4] sm:$0xff]
  %v428 = vld [vmem:[#allocation2 + $0xc] sm:$0xff]
  %v429 = vld [vmem:[#allocation2 + $0x14] sm:$0xf]
  %vm430 = vmand %vm36, %vm37
  %v431 = vsel %vm430, 1, 0
  %v432 = vlaneseq
  %v433 = vshrl.u32 %v432, 7
  %v434 = vsub.s32 0, %v433
  %v435 = vrot.slane %v431, %v434
  %v436 = vlaneseq
  %v437 = vshrl.u32 %v436, 7
  %v438 = vsub.s32 1, %v437
  %v439 = vrot.slane %v431, %v438
  %v440 = vlaneseq
  %v441 = vshrl.u32 %v440, 7
  %v442 = vsub.s32 2, %v441
  %v443 = vrot.slane %v431, %v442
  %v444 = vlaneseq
  %v445 = vshrl.u32 %v444, 7
  %v446 = vsub.s32 3, %v445
  %v447 = vrot.slane %v431, %v446
  %vm448 = vcmp.eq.s32.totalorder %v435, 1
  %vm449 = vcmp.eq.s32.totalorder %v439, 1
  %vm450 = vcmp.eq.s32.totalorder %v443, 1
  %vm451 = vcmp.eq.s32.totalorder %v447, 1
  %v455 = vcombine.high %v427, %v427
  %v456 = vcombine.high %v428, %v428
  %457 = vrot.lane.b32.xlu0 %v427, 113
  %v458 = vpop.permute.xlu0 %457
  %459 = vrot.lane.b32.xlu0 %v455, 113
  %v460 = vpop.permute.xlu0 %459
  %461 = vrot.lane.b32.xlu0 %v428, 113
  %v462 = vpop.permute.xlu0 %461
  %463 = vrot.lane.b32.xlu0 %v456, 113
  %v464 = vpop.permute.xlu0 %463
  %465 = vrot.lane.b32.xlu0 %v429, 113
  %v466 = vpop.permute.xlu0 %465
  %vm467 = vcmask 924672
  %v468 = vsel %vm467, %v458, %v460
  %v469 = vsel %vm467, %v460, %v462
  %v470 = vsel %vm467, %v462, %v464
  %v471 = vsel %vm467, %v464, %v466
  %v476 = vsel %vm448, %v468, 0.0
  %v477 = vsel %vm449, %v469, 0.0
  %v478 = vsel %vm450, %v470, 0.0
  %v479 = vsel %vm451, %v471, 0.0
  %v480 = vpack.c.bf16 %v476, %v476
  %v481 = vpack.c.bf16 %v477, %v477
  %v482 = vpack.c.bf16 %v478, %v478
  %v483 = vpack.c.bf16 %v479, %v479
  %v488 = vunpack.c.l.b16 %v480
  %v489 = vunpack.c.l.b16 %v481
  %v490 = vunpack.c.l.b16 %v482
  %v491 = vunpack.c.l.b16 %v483
  %v492 = vpack.c.b16 %v489, %v488
  %v493 = vpack.c.b16 %v491, %v490
  %496 = vst [vmem:[#allocation3 + $0x30] sm:$0x33] %v492
  %497 = vst [vmem:[#allocation3 + $0x38] sm:$0x33] %v493
  %v498 = vld [vmem:[#allocation2 + $0x4] sm:$0xff]
  %v499 = vld [vmem:[#allocation2 + $0xc] sm:$0xff]
  %v500 = vld [vmem:[#allocation2 + $0x14] sm:$0xf]
  %v501 = vsel %vm36, 1, 0
  %v502 = vlaneseq
  %v503 = vshrl.u32 %v502, 7
  %v504 = vsub.s32 0, %v503
  %v505 = vrot.slane %v501, %v504
  %v506 = vlaneseq
  %v507 = vshrl.u32 %v506, 7
  %v508 = vsub.s32 1, %v507
  %v509 = vrot.slane %v501, %v508
  %v510 = vlaneseq
  %v511 = vshrl.u32 %v510, 7
  %v512 = vsub.s32 2, %v511
  %v513 = vrot.slane %v501, %v512
  %v514 = vlaneseq
  %v515 = vshrl.u32 %v514, 7
  %v516 = vsub.s32 3, %v515
  %v517 = vrot.slane %v501, %v516
  %vm518 = vcmp.eq.s32.totalorder %v505, 1
  %vm519 = vcmp.eq.s32.totalorder %v509, 1
  %vm520 = vcmp.eq.s32.totalorder %v513, 1
  %vm521 = vcmp.eq.s32.totalorder %v517, 1
  %v525 = vcombine.high %v498, %v498
  %v526 = vcombine.high %v499, %v499
  %527 = vrot.lane.b32.xlu0 %v498, 112
  %v528 = vpop.permute.xlu0 %527
  %529 = vrot.lane.b32.xlu0 %v525, 112
  %v530 = vpop.permute.xlu0 %529
  %531 = vrot.lane.b32.xlu0 %v499, 112
  %v532 = vpop.permute.xlu0 %531
  %533 = vrot.lane.b32.xlu0 %v526, 112
  %v534 = vpop.permute.xlu0 %533
  %535 = vrot.lane.b32.xlu0 %v500, 112
  %v536 = vpop.permute.xlu0 %535
  %vm537 = vcmask 916480
  %v538 = vsel %vm537, %v528, %v530
  %v539 = vsel %vm537, %v530, %v532
  %v540 = vsel %vm537, %v532, %v534
  %v541 = vsel %vm537, %v534, %v536
  %v546 = vsel %vm518, %v538, 0.0
  %v547 = vsel %vm519, %v539, 0.0
  %v548 = vsel %vm520, %v540, 0.0
  %v549 = vsel %vm521, %v541, 0.0
  %v550 = vpack.c.bf16 %v546, %v546
  %v551 = vpack.c.bf16 %v547, %v547
  %v552 = vpack.c.bf16 %v548, %v548
  %v553 = vpack.c.bf16 %v549, %v549
  %v558 = vunpack.c.l.b16 %v550
  %v559 = vunpack.c.l.b16 %v551
  %v560 = vunpack.c.l.b16 %v552
  %v561 = vunpack.c.l.b16 %v553
  %v562 = vpack.c.b16 %v559, %v558
  %v563 = vpack.c.b16 %v561, %v560
  %v564 = vrot.slane %v562, 6
  %v565 = vrot.slane %v563, 6
  %568 = vst [vmem:[#allocation3 + $0x30] sm:$0xcc] %v564
  %569 = vst [vmem:[#allocation3 + $0x38] sm:$0xcc] %v565
  %v570 = vld [vmem:[#allocation2 + $0x4] sm:$0xff]
  %v571 = vld [vmem:[#allocation2 + $0xc] sm:$0xff]
  %v572 = vld [vmem:[#allocation2 + $0x14] sm:$0xf]
  %vm573 = vmand %vm36, %vm38
  %v574 = vsel %vm573, 1, 0
  %v575 = vlaneseq
  %v576 = vshrl.u32 %v575, 7
  %v577 = vsub.s32 0, %v576
  %v578 = vrot.slane %v574, %v577
  %v579 = vlaneseq
  %v580 = vshrl.u32 %v579, 7
  %v581 = vsub.s32 1, %v580
  %v582 = vrot.slane %v574, %v581
  %v583 = vlaneseq
  %v584 = vshrl.u32 %v583, 7
  %v585 = vsub.s32 2, %v584
  %v586 = vrot.slane %v574, %v585
  %v587 = vlaneseq
  %v588 = vshrl.u32 %v587, 7
  %v589 = vsub.s32 3, %v588
  %v590 = vrot.slane %v574, %v589
  %vm591 = vcmp.eq.s32.totalorder %v578, 1
  %vm592 = vcmp.eq.s32.totalorder %v582, 1
  %vm593 = vcmp.eq.s32.totalorder %v586, 1
  %vm594 = vcmp.eq.s32.totalorder %v590, 1
  %v598 = vcombine.high %v570, %v570
  %v599 = vcombine.high %v571, %v571
  %600 = vrot.lane.b32.xlu0 %v570, 111
  %v601 = vpop.permute.xlu0 %600
  %602 = vrot.lane.b32.xlu0 %v598, 111
  %v603 = vpop.permute.xlu0 %602
  %604 = vrot.lane.b32.xlu0 %v571, 111
  %v605 = vpop.permute.xlu0 %604
  %606 = vrot.lane.b32.xlu0 %v599, 111
  %v607 = vpop.permute.xlu0 %606
  %608 = vrot.lane.b32.xlu0 %v572, 111
  %v609 = vpop.permute.xlu0 %608
  %vm610 = vcmask 908288
  %v611 = vsel %vm610, %v601, %v603
  %v612 = vsel %vm610, %v603, %v605
  %v613 = vsel %vm610, %v605, %v607
  %v614 = vsel %vm610, %v607, %v609
  %v619 = vsel %vm591, %v611, 0.0
  %v620 = vsel %vm592, %v612, 0.0
  %v621 = vsel %vm593, %v613, 0.0
  %v622 = vsel %vm594, %v614, 0.0
  %v623 = vpack.c.bf16 %v619, %v619
  %v624 = vpack.c.bf16 %v620, %v620
  %v625 = vpack.c.bf16 %v621, %v621
  %v626 = vpack.c.bf16 %v622, %v622
  %v631 = vunpack.c.l.b16 %v623
  %v632 = vunpack.c.l.b16 %v624
  %v633 = vunpack.c.l.b16 %v625
  %v634 = vunpack.c.l.b16 %v626
  %v635 = vpack.c.b16 %v632, %v631
  %v636 = vpack.c.b16 %v634, %v633
  %639 = vst [vmem:[#allocation3 + $0x40] sm:$0x33] %v635
  %640 = vst [vmem:[#allocation3 + $0x48] sm:$0x33] %v636
  %v641 = vld [vmem:[#allocation3] sm:$0xff]
  %v642 = vld [vmem:[#allocation3 + $0x8] sm:$0xff]
  %v643 = vld [vmem:[#allocation3 + $0x10] sm:$0xff]
  %v644 = vld [vmem:[#allocation3 + $0x18] sm:$0xff]
  %v645 = vld [vmem:[#allocation3 + $0x20] sm:$0xff]
  %v646 = vld [vmem:[#allocation3 + $0x28] sm:$0xff]
  %v647 = vld [vmem:[#allocation3 + $0x30] sm:$0xff]
  %v648 = vld [vmem:[#allocation3 + $0x38] sm:$0xff]
  %v649 = vld [vmem:[#allocation3 + $0x40] sm:$0x33]
  %v650 = vld [vmem:[#allocation3 + $0x48] sm:$0x33]
  %v651 = vld [vmem:[%s3] sm:$0x1]
  %v662 = vunpack.c.l.b16 %v641
  %v663 = vunpack.c.h.b16 %v641
  %v664 = vunpack.c.l.b16 %v642
  %v665 = vunpack.c.h.b16 %v642
  %v666 = vunpack.c.l.b16 %v643
  %v667 = vunpack.c.h.b16 %v643
  %v668 = vunpack.c.l.b16 %v644
  %v669 = vunpack.c.h.b16 %v644
  %v670 = vunpack.c.l.b16 %v645
  %v671 = vunpack.c.h.b16 %v645
  %v672 = vunpack.c.l.b16 %v646
  %v673 = vunpack.c.h.b16 %v646
  %v674 = vunpack.c.l.b16 %v647
  %v675 = vunpack.c.h.b16 %v647
  %v676 = vunpack.c.l.b16 %v648
  %v677 = vunpack.c.h.b16 %v648
  %v678 = vunpack.c.l.b16 %v649
  %v679 = vunpack.c.h.b16 %v649
  %v680 = vunpack.c.l.b16 %v650
  %v681 = vunpack.c.h.b16 %v650
  %v682 = vpack.c.b16 %v666, %v662
  %v683 = vpack.c.b16 %v667, %v663
  %v684 = vpack.c.b16 %v668, %v664
  %v685 = vpack.c.b16 %v669, %v665
  %v686 = vpack.c.b16 %v674, %v670
  %v687 = vpack.c.b16 %v675, %v671
  %v688 = vpack.c.b16 %v676, %v672
  %v689 = vpack.c.b16 %v677, %v673
  %v690 = vpack.c.b16 %v678, %v678
  %v691 = vpack.c.b16 %v679, %v679
  %v692 = vpack.c.b16 %v680, %v680
  %v693 = vpack.c.b16 %v681, %v681
  %vm702 = vcmask 293888
  %v704 = vsel %vm702, %v651, 0
  %vm706 = vcmask 1041408
  %v708 = vsel %vm706, %v690, 0
  %v711 = vsel %vm706, %v691, 0
  %v714 = vsel %vm706, %v692, 0
  %v717 = vsel %vm706, %v693, 0
  %719 = vmatprep.subr.bf16.mxu0 0
  %720 = vmatpush1.bf16.msra.mxu0 0
  %721 = vmatprep.subr.bf16.mxu0 0
  %722 = vmatpush1.bf16.msra.mxu0 0
  %723 = vmatprep.subr.bf16.mxu0 0
  %724 = vmatpush1.bf16.msra.mxu0 0
  %725 = vmatprep.subr.bf16.mxu0 0
  %726 = vmatpush1.bf16.msra.mxu0 0
  %727 = vmatprep.subr.bf16.mxu0 0
  %728 = vmatpush1.bf16.msra.mxu0 0
  %729 = vmatprep.subr.bf16.mxu0 %v711
  %730 = vmatpush1.bf16.msra.mxu0 %v708
  %731 = vmatprep.subr.bf16.mxu0 %v687
  %732 = vmatpush1.bf16.msra.mxu0 %v686
  %733 = vmatprep.subr.bf16.mxu0 %v683
  %734 = vmatpush1.bf16.msra.mxu0 %v682
  %735 = vmatprep.subr.bf16.mxu0 0
  %736 = vmatpush2.bf16.msra.mxu0 0
  %737 = vmatprep.subr.bf16.mxu0 0
  %738 = vmatpush2.bf16.msra.mxu0 0
  %739 = vmatprep.subr.bf16.mxu0 0
  %740 = vmatpush2.bf16.msra.mxu0 0
  %741 = vmatprep.subr.bf16.mxu0 0
  %742 = vmatpush2.bf16.msra.mxu0 0
  %743 = vmatprep.subr.bf16.mxu0 0
  %744 = vmatpush2.bf16.msra.mxu0 0
  %745 = vmatprep.subr.bf16.mxu0 0
  %746 = vmatpush2.bf16.msra.mxu0 0
  %747 = vmatprep.subr.bf16.mxu0 0
  %748 = vmatpush2.bf16.msra.mxu0 0
  %749 = vmatprep.subr.bf16.mxu0 0
  %750 = vmatpush2.bf16.msra.mxu0 0
  %751 = vmatprep.mubr.bf16.mxu0 0
  %752 = vmatmul.mubr.bf16.gmra.mxu0 %v704
  %v753 = vpop.f32.mrf.mxu0
  %v754 = vadd.f32 0.0, %v753
  %v755 = vpop.f32.mrf.mxu0
  %v756 = vadd.f32 0.0, %v755
  %v757 = vpop.f32.mrf.mxu0
  %v758 = vpop.f32.mrf.mxu0
  %759 = vdwg.mxu0
  %760 = vmatprep.subr.bf16.mxu0 0
  %761 = vmatpush1.bf16.msra.mxu0 0
  %762 = vmatprep.subr.bf16.mxu0 0
  %763 = vmatpush1.bf16.msra.mxu0 0
  %764 = vmatprep.subr.bf16.mxu0 0
  %765 = vmatpush1.bf16.msra.mxu0 0
  %766 = vmatprep.subr.bf16.mxu0 0
  %767 = vmatpush1.bf16.msra.mxu0 0
  %768 = vmatprep.subr.bf16.mxu0 0
  %769 = vmatpush1.bf16.msra.mxu0 0
  %770 = vmatprep.subr.bf16.mxu0 %v717
  %771 = vmatpush1.bf16.msra.mxu0 %v714
  %772 = vmatprep.subr.bf16.mxu0 %v689
  %773 = vmatpush1.bf16.msra.mxu0 %v688
  %774 = vmatprep.subr.bf16.mxu0 %v685
  %775 = vmatpush1.bf16.msra.mxu0 %v684
  %776 = vmatprep.subr.bf16.mxu0 0
  %777 = vmatpush2.bf16.msra.mxu0 0
  %778 = vmatprep.subr.bf16.mxu0 0
  %779 = vmatpush2.bf16.msra.mxu0 0
  %780 = vmatprep.subr.bf16.mxu0 0
  %781 = vmatpush2.bf16.msra.mxu0 0
  %782 = vmatprep.subr.bf16.mxu0 0
  %783 = vmatpush2.bf16.msra.mxu0 0
  %784 = vmatprep.subr.bf16.mxu0 0
  %785 = vmatpush2.bf16.msra.mxu0 0
  %786 = vmatprep.subr.bf16.mxu0 0
  %787 = vmatpush2.bf16.msra.mxu0 0
  %788 = vmatprep.subr.bf16.mxu0 0
  %789 = vmatpush2.bf16.msra.mxu0 0
  %790 = vmatprep.subr.bf16.mxu0 0
  %791 = vmatpush2.bf16.msra.mxu0 0
  %792 = vmatprep.mubr.bf16.mxu0 0
  %793 = vmatmul.mubr.bf16.gmra.mxu0 %v704
  %v794 = vpop.f32.mrf.mxu0
  %v795 = vadd.f32 0.0, %v794
  %v796 = vpop.f32.mrf.mxu0
  %v797 = vadd.f32 0.0, %v796
  %v798 = vpop.f32.mrf.mxu0
  %v799 = vpop.f32.mrf.mxu0
  %800 = vdwg.mxu0
  %v801 = vld [vmem:[%s4] sm:$0x3]
  %803 = vset.pattern.permute.xlu0 0
  %804 = vperm.xlu0 %803, %v801
  %v805 = vpop.permute.xlu0 %804
  %v807 = vmul.f32 %v754, %v805
  %v808 = vmul.f32 %v756, %v805
  %v809 = vmul.f32 %v795, %v805
  %v810 = vmul.f32 %v797, %v805
  %v811 = vld [vmem:[%s5] sm:$0x3]
  %813 = vset.pattern.permute.xlu0 0
  %814 = vperm.xlu0 %813, %v811
  %v815 = vpop.permute.xlu0 %814
  %v817 = vadd.f32 %v807, %v815
  %v818 = vadd.f32 %v808, %v815
  %v819 = vadd.f32 %v809, %v815
  %v820 = vadd.f32 %v810, %v815
  %v821 = vadd.f32 %v817, 3.0
  %v822 = vadd.f32 %v818, 3.0
  %v823 = vadd.f32 %v819, 3.0
  %v824 = vadd.f32 %v820, 3.0
  %v825 = vmax.f32 %v821, 0.0
  %v826 = vmax.f32 %v822, 0.0
  %v827 = vmax.f32 %v823, 0.0
  %v828 = vmax.f32 %v824, 0.0
  %v829 = vmin.f32 %v825, 6.0
  %v830 = vmin.f32 %v826, 6.0
  %v831 = vmin.f32 %v827, 6.0
  %v832 = vmin.f32 %v828, 6.0
  %v833 = vmul.f32 %v817, %v829
  %v834 = vmul.f32 %v818, %v830
  %v835 = vmul.f32 %v819, %v831
  %v836 = vmul.f32 %v820, %v832
  %v837 = vmul.f32 %v833, 0.16666667
  %v838 = vmul.f32 %v834, 0.16666667
  %v839 = vmul.f32 %v835, 0.16666667
  %v840 = vmul.f32 %v836, 0.16666667
  %v845 = vcombine.low %v837, %v838
  %v846 = vcombine.low %v839, %v840
  %849 = vst [vmem:[#allocation2 + $0x4] sm:$0x33] %v845
  %850 = vst [vmem:[#allocation2 + $0xc] sm:$0x33] %v846
  %v851 = vld [vmem:[#allocation2] sm:$0x33]
  %v852 = vld [vmem:[#allocation2 + $0x8] sm:$0x33]
  %v853 = vld [vmem:[#allocation2 + $0x10] sm:$0x3]
  %v857 = vcombine.high %v851, %v851
  %v858 = vcombine.high %v852, %v852
  %859 = vrot.lane.b32.xlu0 %v851, 17
  %v860 = vpop.permute.xlu0 %859
  %861 = vrot.lane.b32.xlu0 %v857, 17
  %v862 = vpop.permute.xlu0 %861
  %863 = vrot.lane.b32.xlu0 %v852, 17
  %v864 = vpop.permute.xlu0 %863
  %865 = vrot.lane.b32.xlu0 %v858, 17
  %v866 = vpop.permute.xlu0 %865
  %867 = vrot.lane.b32.xlu0 %v853, 17
  %v868 = vpop.permute.xlu0 %867
  %v869 = vsel %vm85, %v860, %v862
  %v870 = vsel %vm85, %v862, %v864
  %v871 = vsel %vm85, %v864, %v866
  %v872 = vsel %vm85, %v866, %v868
  %v877 = vsel %vm66, %v869, 0.0
  %v878 = vsel %vm67, %v870, 0.0
  %v879 = vsel %vm68, %v871, 0.0
  %v880 = vsel %vm69, %v872, 0.0
  %v881 = vpack.c.bf16 %v877, %v877
  %v882 = vpack.c.bf16 %v878, %v878
  %v883 = vpack.c.bf16 %v879, %v879
  %v884 = vpack.c.bf16 %v880, %v880
  %v889 = vunpack.c.l.b16 %v881
  %v890 = vunpack.c.l.b16 %v882
  %v891 = vunpack.c.l.b16 %v883
  %v892 = vunpack.c.l.b16 %v884
  %v893 = vpack.c.b16 %v890, %v889
  %v894 = vpack.c.b16 %v892, %v891
  %897 = vst [vmem:[#allocation3] sm:$0x11] %v893
  %898 = vst [vmem:[#allocation3 + $0x8] sm:$0x11] %v894
  %v899 = vld [vmem:[#allocation2] sm:$0x33]
  %v900 = vld [vmem:[#allocation2 + $0x8] sm:$0x33]
  %v901 = vld [vmem:[#allocation2 + $0x10] sm:$0x3]
  %v905 = vcombine.high %v899, %v899
  %v906 = vcombine.high %v900, %v900
  %907 = vrot.lane.b32.xlu0 %v899, 16
  %v908 = vpop.permute.xlu0 %907
  %909 = vrot.lane.b32.xlu0 %v905, 16
  %v910 = vpop.permute.xlu0 %909
  %911 = vrot.lane.b32.xlu0 %v900, 16
  %v912 = vpop.permute.xlu0 %911
  %913 = vrot.lane.b32.xlu0 %v906, 16
  %v914 = vpop.permute.xlu0 %913
  %915 = vrot.lane.b32.xlu0 %v901, 16
  %v916 = vpop.permute.xlu0 %915
  %v917 = vsel %vm155, %v908, %v910
  %v918 = vsel %vm155, %v910, %v912
  %v919 = vsel %vm155, %v912, %v914
  %v920 = vsel %vm155, %v914, %v916
  %v925 = vsel %vm136, %v917, 0.0
  %v926 = vsel %vm137, %v918, 0.0
  %v927 = vsel %vm138, %v919, 0.0
  %v928 = vsel %vm139, %v920, 0.0
  %v929 = vpack.c.bf16 %v925, %v925
  %v930 = vpack.c.bf16 %v926, %v926
  %v931 = vpack.c.bf16 %v927, %v927
  %v932 = vpack.c.bf16 %v928, %v928
  %v937 = vunpack.c.l.b16 %v929
  %v938 = vunpack.c.l.b16 %v930
  %v939 = vunpack.c.l.b16 %v931
  %v940 = vunpack.c.l.b16 %v932
  %v941 = vpack.c.b16 %v938, %v937
  %v942 = vpack.c.b16 %v940, %v939
  %v943 = vrot.slane %v941, 7
  %v944 = vrot.slane %v942, 7
  %947 = vst [vmem:[#allocation3] sm:$0x22] %v943
  %948 = vst [vmem:[#allocation3 + $0x8] sm:$0x22] %v944
  %v949 = vld [vmem:[#allocation2] sm:$0x33]
  %v950 = vld [vmem:[#allocation2 + $0x8] sm:$0x33]
  %v951 = vld [vmem:[#allocation2 + $0x10] sm:$0x3]
  %v955 = vcombine.high %v949, %v949
  %v956 = vcombine.high %v950, %v950
  %957 = vrot.lane.b32.xlu0 %v949, 15
  %v958 = vpop.permute.xlu0 %957
  %959 = vrot.lane.b32.xlu0 %v955, 15
  %v960 = vpop.permute.xlu0 %959
  %961 = vrot.lane.b32.xlu0 %v950, 15
  %v962 = vpop.permute.xlu0 %961
  %963 = vrot.lane.b32.xlu0 %v956, 15
  %v964 = vpop.permute.xlu0 %963
  %965 = vrot.lane.b32.xlu0 %v951, 15
  %v966 = vpop.permute.xlu0 %965
  %v967 = vsel %vm228, %v958, %v960
  %v968 = vsel %vm228, %v960, %v962
  %v969 = vsel %vm228, %v962, %v964
  %v970 = vsel %vm228, %v964, %v966
  %v975 = vsel %vm209, %v967, 0.0
  %v976 = vsel %vm210, %v968, 0.0
  %v977 = vsel %vm211, %v969, 0.0
  %v978 = vsel %vm212, %v970, 0.0
  %v979 = vpack.c.bf16 %v975, %v975
  %v980 = vpack.c.bf16 %v976, %v976
  %v981 = vpack.c.bf16 %v977, %v977
  %v982 = vpack.c.bf16 %v978, %v978
  %v987 = vunpack.c.l.b16 %v979
  %v988 = vunpack.c.l.b16 %v980
  %v989 = vunpack.c.l.b16 %v981
  %v990 = vunpack.c.l.b16 %v982
  %v991 = vpack.c.b16 %v988, %v987
  %v992 = vpack.c.b16 %v990, %v989
  %v993 = vrot.slane %v991, 6
  %v994 = vrot.slane %v992, 6
  %997 = vst [vmem:[#allocation3] sm:$0x44] %v993
  %998 = vst [vmem:[#allocation3 + $0x8] sm:$0x44] %v994
  %v999 = vld [vmem:[#allocation2] sm:$0x33]
  %v1000 = vld [vmem:[#allocation2 + $0x8] sm:$0x33]
  %v1001 = vld [vmem:[#allocation2 + $0x10] sm:$0x3]
  %v1005 = vcombine.high %v999, %v999
  %v1006 = vcombine.high %v1000, %v1000
  %1007 = vrot.lane.b32.xlu0 %v999, 1
  %v1008 = vpop.permute.xlu0 %1007
  %1009 = vrot.lane.b32.xlu0 %v1005, 1
  %v1010 = vpop.permute.xlu0 %1009
  %1011 = vrot.lane.b32.xlu0 %v1000, 1
  %v1012 = vpop.permute.xlu0 %1011
  %1013 = vrot.lane.b32.xlu0 %v1006, 1
  %v1014 = vpop.permute.xlu0 %1013
  %1015 = vrot.lane.b32.xlu0 %v1001, 1
  %v1016 = vpop.permute.xlu0 %1015
  %v1017 = vsel %vm298, %v1008, %v1010
  %v1018 = vsel %vm298, %v1010, %v1012
  %v1019 = vsel %vm298, %v1012, %v1014
  %v1020 = vsel %vm298, %v1014, %v1016
  %v1025 = vsel %vm279, %v1017, 0.0
  %v1026 = vsel %vm280, %v1018, 0.0
  %v1027 = vsel %vm281, %v1019, 0.0
  %v1028 = vsel %vm282, %v1020, 0.0
  %v1029 = vpack.c.bf16 %v1025, %v1025
  %v1030 = vpack.c.bf16 %v1026, %v1026
  %v1031 = vpack.c.bf16 %v1027, %v1027
  %v1032 = vpack.c.bf16 %v1028, %v1028
  %v1037 = vunpack.c.l.b16 %v1029
  %v1038 = vunpack.c.l.b16 %v1030
  %v1039 = vunpack.c.l.b16 %v1031
  %v1040 = vunpack.c.l.b16 %v1032
  %v1041 = vpack.c.b16 %v1038, %v1037
  %v1042 = vpack.c.b16 %v1040, %v1039
  %v1043 = vrot.slane %v1041, 5
  %v1044 = vrot.slane %v1042, 5
  %1047 = vst [vmem:[#allocation3] sm:$0x88] %v1043
  %1048 = vst [vmem:[#allocation3 + $0x8] sm:$0x88] %v1044
  %v1049 = vpack.c.bf16 %v837, %v837
  %v1050 = vpack.c.bf16 %v838, %v838
  %v1051 = vpack.c.bf16 %v839, %v839
  %v1052 = vpack.c.bf16 %v840, %v840
  %v1057 = vunpack.c.l.b16 %v1049
  %v1058 = vunpack.c.l.b16 %v1050
  %v1059 = vunpack.c.l.b16 %v1051
  %v1060 = vunpack.c.l.b16 %v1052
  %v1061 = vpack.c.b16 %v1058, %v1057
  %v1062 = vpack.c.b16 %v1060, %v1059
  %1065 = vst [vmem:[#allocation3 + $0x10] sm:$0x11] %v1061
  %1066 = vst [vmem:[#allocation3 + $0x18] sm:$0x11] %v1062
  %v1067 = vld [vmem:[#allocation2 + $0x4] sm:$0x33]
  %v1068 = vld [vmem:[#allocation2 + $0xc] sm:$0x33]
  %v1069 = vld [vmem:[#allocation2 + $0x14] sm:$0x3]
  %v1073 = vcombine.high %v1067, %v1067
  %v1074 = vcombine.high %v1068, %v1068
  %1075 = vrot.lane.b32.xlu0 %v1067, 127
  %v1076 = vpop.permute.xlu0 %1075
  %1077 = vrot.lane.b32.xlu0 %v1073, 127
  %v1078 = vpop.permute.xlu0 %1077
  %1079 = vrot.lane.b32.xlu0 %v1068, 127
  %v1080 = vpop.permute.xlu0 %1079
  %1081 = vrot.lane.b32.xlu0 %v1074, 127
  %v1082 = vpop.permute.xlu0 %1081
  %1083 = vrot.lane.b32.xlu0 %v1069, 127
  %v1084 = vpop.permute.xlu0 %1083
  %v1085 = vsel %vm394, %v1076, %v1078
  %v1086 = vsel %vm394, %v1078, %v1080
  %v1087 = vsel %vm394, %v1080, %v1082
  %v1088 = vsel %vm394, %v1082, %v1084
  %v1093 = vsel %vm375, %v1085, 0.0
  %v1094 = vsel %vm376, %v1086, 0.0
  %v1095 = vsel %vm377, %v1087, 0.0
  %v1096 = vsel %vm378, %v1088, 0.0
  %v1097 = vpack.c.bf16 %v1093, %v1093
  %v1098 = vpack.c.bf16 %v1094, %v1094
  %v1099 = vpack.c.bf16 %v1095, %v1095
  %v1100 = vpack.c.bf16 %v1096, %v1096
  %v1105 = vunpack.c.l.b16 %v1097
  %v1106 = vunpack.c.l.b16 %v1098
  %v1107 = vunpack.c.l.b16 %v1099
  %v1108 = vunpack.c.l.b16 %v1100
  %v1109 = vpack.c.b16 %v1106, %v1105
  %v1110 = vpack.c.b16 %v1108, %v1107
  %v1111 = vrot.slane %v1109, 7
  %v1112 = vrot.slane %v1110, 7
  %1115 = vst [vmem:[#allocation3 + $0x10] sm:$0x22] %v1111
  %1116 = vst [vmem:[#allocation3 + $0x18] sm:$0x22] %v1112
  %v1117 = vld [vmem:[#allocation2 + $0x4] sm:$0x33]
  %v1118 = vld [vmem:[#allocation2 + $0xc] sm:$0x33]
  %v1119 = vld [vmem:[#allocation2 + $0x14] sm:$0x3]
  %v1123 = vcombine.high %v1117, %v1117
  %v1124 = vcombine.high %v1118, %v1118
  %1125 = vrot.lane.b32.xlu0 %v1117, 113
  %v1126 = vpop.permute.xlu0 %1125
  %1127 = vrot.lane.b32.xlu0 %v1123, 113
  %v1128 = vpop.permute.xlu0 %1127
  %1129 = vrot.lane.b32.xlu0 %v1118, 113
  %v1130 = vpop.permute.xlu0 %1129
  %1131 = vrot.lane.b32.xlu0 %v1124, 113
  %v1132 = vpop.permute.xlu0 %1131
  %1133 = vrot.lane.b32.xlu0 %v1119, 113
  %v1134 = vpop.permute.xlu0 %1133
  %v1135 = vsel %vm467, %v1126, %v1128
  %v1136 = vsel %vm467, %v1128, %v1130
  %v1137 = vsel %vm467, %v1130, %v1132
  %v1138 = vsel %vm467, %v1132, %v1134
  %v1143 = vsel %vm448, %v1135, 0.0
  %v1144 = vsel %vm449, %v1136, 0.0
  %v1145 = vsel %vm450, %v1137, 0.0
  %v1146 = vsel %vm451, %v1138, 0.0
  %v1147 = vpack.c.bf16 %v1143, %v1143
  %v1148 = vpack.c.bf16 %v1144, %v1144
  %v1149 = vpack.c.bf16 %v1145, %v1145
  %v1150 = vpack.c.bf16 %v1146, %v1146
  %v1155 = vunpack.c.l.b16 %v1147
  %v1156 = vunpack.c.l.b16 %v1148
  %v1157 = vunpack.c.l.b16 %v1149
  %v1158 = vunpack.c.l.b16 %v1150
  %v1159 = vpack.c.b16 %v1156, %v1155
  %v1160 = vpack.c.b16 %v1158, %v1157
  %v1161 = vrot.slane %v1159, 6
  %v1162 = vrot.slane %v1160, 6
  %1165 = vst [vmem:[#allocation3 + $0x10] sm:$0x44] %v1161
  %1166 = vst [vmem:[#allocation3 + $0x18] sm:$0x44] %v1162
  %v1167 = vld [vmem:[#allocation2 + $0x4] sm:$0x33]
  %v1168 = vld [vmem:[#allocation2 + $0xc] sm:$0x33]
  %v1169 = vld [vmem:[#allocation2 + $0x14] sm:$0x3]
  %v1173 = vcombine.high %v1167, %v1167
  %v1174 = vcombine.high %v1168, %v1168
  %1175 = vrot.lane.b32.xlu0 %v1167, 112
  %v1176 = vpop.permute.xlu0 %1175
  %1177 = vrot.lane.b32.xlu0 %v1173, 112
  %v1178 = vpop.permute.xlu0 %1177
  %1179 = vrot.lane.b32.xlu0 %v1168, 112
  %v1180 = vpop.permute.xlu0 %1179
  %1181 = vrot.lane.b32.xlu0 %v1174, 112
  %v1182 = vpop.permute.xlu0 %1181
  %1183 = vrot.lane.b32.xlu0 %v1169, 112
  %v1184 = vpop.permute.xlu0 %1183
  %v1185 = vsel %vm537, %v1176, %v1178
  %v1186 = vsel %vm537, %v1178, %v1180
  %v1187 = vsel %vm537, %v1180, %v1182
  %v1188 = vsel %vm537, %v1182, %v1184
  %v1193 = vsel %vm518, %v1185, 0.0
  %v1194 = vsel %vm519, %v1186, 0.0
  %v1195 = vsel %vm520, %v1187, 0.0
  %v1196 = vsel %vm521, %v1188, 0.0
  %v1197 = vpack.c.bf16 %v1193, %v1193
  %v1198 = vpack.c.bf16 %v1194, %v1194
  %v1199 = vpack.c.bf16 %v1195, %v1195
  %v1200 = vpack.c.bf16 %v1196, %v1196
  %v1205 = vunpack.c.l.b16 %v1197
  %v1206 = vunpack.c.l.b16 %v1198
  %v1207 = vunpack.c.l.b16 %v1199
  %v1208 = vunpack.c.l.b16 %v1200
  %v1209 = vpack.c.b16 %v1206, %v1205
  %v1210 = vpack.c.b16 %v1208, %v1207
  %v1211 = vrot.slane %v1209, 5
  %v1212 = vrot.slane %v1210, 5
  %1215 = vst [vmem:[#allocation3 + $0x10] sm:$0x88] %v1211
  %1216 = vst [vmem:[#allocation3 + $0x18] sm:$0x88] %v1212
  %v1217 = vld [vmem:[#allocation2 + $0x4] sm:$0x33]
  %v1218 = vld [vmem:[#allocation2 + $0xc] sm:$0x33]
  %v1219 = vld [vmem:[#allocation2 + $0x14] sm:$0x3]
  %v1223 = vcombine.high %v1217, %v1217
  %v1224 = vcombine.high %v1218, %v1218
  %1225 = vrot.lane.b32.xlu0 %v1217, 111
  %v1226 = vpop.permute.xlu0 %1225
  %1227 = vrot.lane.b32.xlu0 %v1223, 111
  %v1228 = vpop.permute.xlu0 %1227
  %1229 = vrot.lane.b32.xlu0 %v1218, 111
  %v1230 = vpop.permute.xlu0 %1229
  %1231 = vrot.lane.b32.xlu0 %v1224, 111
  %v1232 = vpop.permute.xlu0 %1231
  %1233 = vrot.lane.b32.xlu0 %v1219, 111
  %v1234 = vpop.permute.xlu0 %1233
  %v1235 = vsel %vm610, %v1226, %v1228
  %v1236 = vsel %vm610, %v1228, %v1230
  %v1237 = vsel %vm610, %v1230, %v1232
  %v1238 = vsel %vm610, %v1232, %v1234
  %v1243 = vsel %vm591, %v1235, 0.0
  %v1244 = vsel %vm592, %v1236, 0.0
  %v1245 = vsel %vm593, %v1237, 0.0
  %v1246 = vsel %vm594, %v1238, 0.0
  %v1247 = vpack.c.bf16 %v1243, %v1243
  %v1248 = vpack.c.bf16 %v1244, %v1244
  %v1249 = vpack.c.bf16 %v1245, %v1245
  %v1250 = vpack.c.bf16 %v1246, %v1246
  %v1255 = vunpack.c.l.b16 %v1247
  %v1256 = vunpack.c.l.b16 %v1248
  %v1257 = vunpack.c.l.b16 %v1249
  %v1258 = vunpack.c.l.b16 %v1250
  %v1259 = vpack.c.b16 %v1256, %v1255
  %v1260 = vpack.c.b16 %v1258, %v1257
  %1263 = vst [vmem:[#allocation3 + $0x20] sm:$0x11] %v1259
  %1264 = vst [vmem:[#allocation3 + $0x28] sm:$0x11] %v1260
  %v1265 = vld [vmem:[#allocation3] sm:$0xff]
  %v1266 = vld [vmem:[#allocation3 + $0x8] sm:$0xff]
  %v1267 = vld [vmem:[#allocation3 + $0x10] sm:$0xff]
  %v1268 = vld [vmem:[#allocation3 + $0x18] sm:$0xff]
  %v1269 = vld [vmem:[#allocation3 + $0x20] sm:$0x11]
  %v1270 = vld [vmem:[#allocation3 + $0x28] sm:$0x11]
  %v1271 = vld [vmem:[%s6] sm:$0x3]
  %v1278 = vunpack.c.l.b16 %v1265
  %v1279 = vunpack.c.h.b16 %v1265
  %v1280 = vunpack.c.l.b16 %v1266
  %v1281 = vunpack.c.h.b16 %v1266
  %v1282 = vunpack.c.l.b16 %v1267
  %v1283 = vunpack.c.h.b16 %v1267
  %v1284 = vunpack.c.l.b16 %v1268
  %v1285 = vunpack.c.h.b16 %v1268
  %v1286 = vunpack.c.l.b16 %v1269
  %v1287 = vunpack.c.h.b16 %v1269
  %v1288 = vunpack.c.l.b16 %v1270
  %v1289 = vunpack.c.h.b16 %v1270
  %v1290 = vpack.c.b16 %v1282, %v1278
  %v1291 = vpack.c.b16 %v1283, %v1279
  %v1292 = vpack.c.b16 %v1284, %v1280
  %v1293 = vpack.c.b16 %v1285, %v1281
  %v1294 = vpack.c.b16 %v1286, %v1286
  %v1295 = vpack.c.b16 %v1287, %v1287
  %v1296 = vpack.c.b16 %v1288, %v1288
  %v1297 = vpack.c.b16 %v1289, %v1289
  %vm1302 = vcmask 146432
  %v1304 = vsel %vm1302, %v1271, 0
  %vm1306 = vcmask 1040384
  %v1308 = vsel %vm1306, %v1294, 0
  %v1311 = vsel %vm1306, %v1295, 0
  %v1314 = vsel %vm1306, %v1296, 0
  %v1317 = vsel %vm1306, %v1297, 0
  %1319 = vmatprep.subr.bf16.mxu0 0
  %1320 = vmatpush1.bf16.msra.mxu0 0
  %1321 = vmatprep.subr.bf16.mxu0 0
  %1322 = vmatpush1.bf16.msra.mxu0 0
  %1323 = vmatprep.subr.bf16.mxu0 0
  %1324 = vmatpush1.bf16.msra.mxu0 0
  %1325 = vmatprep.subr.bf16.mxu0 0
  %1326 = vmatpush1.bf16.msra.mxu0 0
  %1327 = vmatprep.subr.bf16.mxu0 0
  %1328 = vmatpush1.bf16.msra.mxu0 0
  %1329 = vmatprep.subr.bf16.mxu0 0
  %1330 = vmatpush1.bf16.msra.mxu0 0
  %1331 = vmatprep.subr.bf16.mxu0 %v1311
  %1332 = vmatpush1.bf16.msra.mxu0 %v1308
  %1333 = vmatprep.subr.bf16.mxu0 %v1291
  %1334 = vmatpush1.bf16.msra.mxu0 %v1290
  %1335 = vmatprep.subr.bf16.mxu0 0
  %1336 = vmatpush2.bf16.msra.mxu0 0
  %1337 = vmatprep.subr.bf16.mxu0 0
  %1338 = vmatpush2.bf16.msra.mxu0 0
  %1339 = vmatprep.subr.bf16.mxu0 0
  %1340 = vmatpush2.bf16.msra.mxu0 0
  %1341 = vmatprep.subr.bf16.mxu0 0
  %1342 = vmatpush2.bf16.msra.mxu0 0
  %1343 = vmatprep.subr.bf16.mxu0 0
  %1344 = vmatpush2.bf16.msra.mxu0 0
  %1345 = vmatprep.subr.bf16.mxu0 0
  %1346 = vmatpush2.bf16.msra.mxu0 0
  %1347 = vmatprep.subr.bf16.mxu0 0
  %1348 = vmatpush2.bf16.msra.mxu0 0
  %1349 = vmatprep.subr.bf16.mxu0 0
  %1350 = vmatpush2.bf16.msra.mxu0 0
  %1351 = vmatprep.mubr.bf16.mxu0 0
  %1352 = vmatmul.mubr.bf16.gmra.mxu0 %v1304
  %v1353 = vpop.f32.mrf.mxu0
  %v1354 = vadd.f32 0.0, %v1353
  %v1355 = vpop.f32.mrf.mxu0
  %v1356 = vadd.f32 0.0, %v1355
  %v1357 = vpop.f32.mrf.mxu0
  %v1358 = vpop.f32.mrf.mxu0
  %1359 = vdwg.mxu0
  %1360 = vmatprep.subr.bf16.mxu0 0
  %1361 = vmatpush1.bf16.msra.mxu0 0
  %1362 = vmatprep.subr.bf16.mxu0 0
  %1363 = vmatpush1.bf16.msra.mxu0 0
  %1364 = vmatprep.subr.bf16.mxu0 0
  %1365 = vmatpush1.bf16.msra.mxu0 0
  %1366 = vmatprep.subr.bf16.mxu0 0
  %1367 = vmatpush1.bf16.msra.mxu0 0
  %1368 = vmatprep.subr.bf16.mxu0 0
  %1369 = vmatpush1.bf16.msra.mxu0 0
  %1370 = vmatprep.subr.bf16.mxu0 0
  %1371 = vmatpush1.bf16.msra.mxu0 0
  %1372 = vmatprep.subr.bf16.mxu0 %v1317
  %1373 = vmatpush1.bf16.msra.mxu0 %v1314
  %1374 = vmatprep.subr.bf16.mxu0 %v1293
  %1375 = vmatpush1.bf16.msra.mxu0 %v1292
  %1376 = vmatprep.subr.bf16.mxu0 0
  %1377 = vmatpush2.bf16.msra.mxu0 0
  %1378 = vmatprep.subr.bf16.mxu0 0
  %1379 = vmatpush2.bf16.msra.mxu0 0
  %1380 = vmatprep.subr.bf16.mxu0 0
  %1381 = vmatpush2.bf16.msra.mxu0 0
  %1382 = vmatprep.subr.bf16.mxu0 0
  %1383 = vmatpush2.bf16.msra.mxu0 0
  %1384 = vmatprep.subr.bf16.mxu0 0
  %1385 = vmatpush2.bf16.msra.mxu0 0
  %1386 = vmatprep.subr.bf16.mxu0 0
  %1387 = vmatpush2.bf16.msra.mxu0 0
  %1388 = vmatprep.subr.bf16.mxu0 0
  %1389 = vmatpush2.bf16.msra.mxu0 0
  %1390 = vmatprep.subr.bf16.mxu0 0
  %1391 = vmatpush2.bf16.msra.mxu0 0
  %1392 = vmatprep.mubr.bf16.mxu0 0
  %1393 = vmatmul.mubr.bf16.gmra.mxu0 %v1304
  %v1394 = vpop.f32.mrf.mxu0
  %v1395 = vadd.f32 0.0, %v1394
  %v1396 = vpop.f32.mrf.mxu0
  %v1397 = vadd.f32 0.0, %v1396
  %v1398 = vpop.f32.mrf.mxu0
  %v1399 = vpop.f32.mrf.mxu0
  %1400 = vdwg.mxu0
  %v1401 = vld [vmem:[%s7] sm:$0xf]
  %1403 = vset.pattern.permute.xlu0 0
  %1404 = vperm.xlu0 %1403, %v1401
  %v1405 = vpop.permute.xlu0 %1404
  %v1407 = vmul.f32 %v1354, %v1405
  %v1408 = vmul.f32 %v1356, %v1405
  %v1409 = vmul.f32 %v1395, %v1405
  %v1410 = vmul.f32 %v1397, %v1405
  %v1411 = vld [vmem:[%s8] sm:$0xf]
  %1413 = vset.pattern.permute.xlu0 0
  %1414 = vperm.xlu0 %1413, %v1411
  %v1415 = vpop.permute.xlu0 %1414
  %v1417 = vadd.f32 %v1407, %v1415
  %v1418 = vadd.f32 %v1408, %v1415
  %v1419 = vadd.f32 %v1409, %v1415
  %v1420 = vadd.f32 %v1410, %v1415
  %v1421 = vadd.f32 %v1417, 3.0
  %v1422 = vadd.f32 %v1418, 3.0
  %v1423 = vadd.f32 %v1419, 3.0
  %v1424 = vadd.f32 %v1420, 3.0
  %v1425 = vmax.f32 %v1421, 0.0
  %v1426 = vmax.f32 %v1422, 0.0
  %v1427 = vmax.f32 %v1423, 0.0
  %v1428 = vmax.f32 %v1424, 0.0
  %v1429 = vmin.f32 %v1425, 6.0
  %v1430 = vmin.f32 %v1426, 6.0
  %v1431 = vmin.f32 %v1427, 6.0
  %v1432 = vmin.f32 %v1428, 6.0
  %v1433 = vmul.f32 %v1417, %v1429
  %v1434 = vmul.f32 %v1418, %v1430
  %v1435 = vmul.f32 %v1419, %v1431
  %v1436 = vmul.f32 %v1420, %v1432
  %v1437 = vmul.f32 %v1433, 0.16666667
  %v1438 = vmul.f32 %v1434, 0.16666667
  %v1439 = vmul.f32 %v1435, 0.16666667
  %v1440 = vmul.f32 %v1436, 0.16666667
  %v1441 = vadd.f32 %v1437, %v41
  %v1442 = vadd.f32 %v1438, %v333
  %v1443 = vadd.f32 %v1439, %v42
  %v1444 = vadd.f32 %v1440, %v334
  %v1449 = vcombine.low %v1441, %v1442
  %v1450 = vcombine.low %v1443, %v1444
  %1453 = vst [vmem:[%s9] sm:$0xff] %v1449
  %1454 = vst [vmem:[%s9 + $0x8] sm:$0xff] %v1450
  // Predicated region
  $region38: #{bottleneck_forward.1} parent=0 // pred_check
    _
  $region39: #{bottleneck_forward.1} parent=0 // pred_check_branch
    %1456 = sbr.rel (0) target = $region41
  $region40: #{bottleneck_forward.1} parent=0 // pred_region
    _
  $region41: #{bottleneck_forward.1} parent=0 // pred_fallthru
    _
  // Predicated region
  $region42: #{bottleneck_forward.1} parent=0 // pred_check
    _
  $region43: #{bottleneck_forward.1} parent=0 // pred_check_branch
    %1458 = sbr.rel (0) target = $region45
  $region44: #{bottleneck_forward.1} parent=0 // pred_region
    _
  $region45: #{bottleneck_forward.1} parent=0 // pred_fallthru
    _

</llo_original>
